<compile_context>
chip_gen: v7x
topology: tpu7x:2x2x1
jax: 0.10.0
libtpu: 0.0.40
codegen_flags: <defaults>
</compile_context>

<pallas_src>
import functools

import jax
import jax.numpy as jnp
import numpy as np
from jax.experimental import pallas as pl
from jax.experimental.pallas import tpu as pltpu


def _round_up(x, m):
    return ((x + m - 1) // m) * m


# ----------------------------------------------------------------------------
# Pass 1: MLP -> LayerNorm -> fc_att -> sigmoid -> exp((s - 1)/T)
#         plus per-tile partial group sums (one-hot^T @ e).
# ----------------------------------------------------------------------------
def _scores_kernel(temperature, compute_dtype,
                   x_ref, row_ref,
                   w1_ref, b1_ref, w2_ref, b2_ref,
                   g_ref, bln_ref, wa_ref, ba_ref,
                   e_ref, psum_ref):
    cd = compute_dtype
    x = x_ref[...].astype(cd)                                        # [TM, D]

    # h = relu(fc1(x) + b1_eff)     (alpha already folded into b1_eff)
    h = jnp.dot(x, w1_ref[...].astype(cd),
                preferred_element_type=jnp.float32) + b1_ref[...]
    h = jnp.maximum(h, 0.0)                                          # [TM, H1]

    # h = relu(fc2(h))
    h = jnp.dot(h.astype(cd), w2_ref[...].astype(cd),
                preferred_element_type=jnp.float32) + b2_ref[...]
    h = jnp.maximum(h, 0.0)                                          # [TM, D]

    # LayerNorm over last dim: f32 stats, one-pass variance, eps = 1e-5.
    mean = jnp.mean(h, axis=-1, keepdims=True)
    var = jnp.mean(h * h, axis=-1, keepdims=True) - mean * mean
    hn = (h - mean) * jax.lax.rsqrt(var + 1e-5)
    hn = hn * g_ref[...] + bln_ref[...]                              # [TM, D]

    # raw attention scores (heads padded to HP), sigmoid, scaled exp.
    raw = jnp.dot(hn.astype(cd), wa_ref[...].astype(cd),
                  preferred_element_type=jnp.float32) + ba_ref[...]  # [TM, HP]
    s = 1.0 / (1.0 + jnp.exp(-raw))                                  # sigmoid
    # softmax is shift-invariant; shift by the sigmoid upper bound (1.0) so the
    # exp argument is <= 0 and cannot overflow for small temperatures.
    e = jnp.exp((s - 1.0) * (1.0 / temperature))                     # [TM, HP]
    e_ref[...] = e

    # Partial group sums for this tile: onehot_t [GP, TM] @ e [TM, HP].
    gp = psum_ref.shape[1]
    tm = e.shape[0]
    gids = jax.lax.broadcasted_iota(jnp.int32, (gp, tm), 0)
    onehot_t = (row_ref[0] == gids).astype(jnp.float32)              # [GP, TM]
    psum_ref[0] = jnp.dot(onehot_t, e, preferred_element_type=jnp.float32)


# ----------------------------------------------------------------------------
# Pass 2: gather each row's group denominator and normalize.
# ----------------------------------------------------------------------------
def _normalize_kernel(e_ref, row_ref, denom_ref, out_ref):
    e = e_ref[...]                                                   # [TM, HP]
    tm = e.shape[0]
    gp = denom_ref.shape[0]
    gids = jax.lax.broadcasted_iota(jnp.int32, (tm, gp), 1)
    onehot = (row_ref[...] == gids).astype(jnp.float32)              # [TM, GP]
    denom = jnp.dot(onehot, denom_ref[...],
                    preferred_element_type=jnp.float32)              # [TM, HP]
    out_ref[...] = e / denom


# ----------------------------------------------------------------------------
# Wrapper
# ----------------------------------------------------------------------------
def enhanced_attention_forward(x, row, alpha, params, *, num_groups,
                               temperature=1.0, block_rows=512,
                               compute_dtype=jnp.float32):
    """x: [N, D] f32, row: [N] int group ids in [0, num_groups), alpha: scalar/None."""
    n, d = x.shape
    h1 = params["w1"].shape[1]
    num_heads = params["wa"].shape[1]

    # Padded sizes (sublane quantum 8 for f32).
    hp = max(8, _round_up(num_heads, 8))            # padded head count
    gp = max(8, _round_up(num_groups + 1, 8))       # +1 reserves a pad-row group
    tm = max(8, min(_round_up(block_rows, 8), _round_up(n, 8)))
    n_pad = _round_up(n, tm)
    num_tiles = n_pad // tm

    # Fold the global scalar alpha into the fc1 bias (drop the concat column).
    a = jnp.asarray(0.0 if alpha is None else alpha, jnp.float32)
    w1_full = params["w1"]                          # [D+1, H1] (PyTorch-style, transposed)
    w1 = w1_full[:d, :]
    b1_eff = params["b1"] + a * w1_full[d:d + 1, :]  # [1, H1]

    # Pad fc_att to hp head columns (zeros; dropped in the final head mean).
    wa, ba = params["wa"], params["ba"]
    if hp != num_heads:
        wa = jnp.concatenate([wa, jnp.zeros((d, hp - num_heads), wa.dtype)], 1)
        ba = jnp.concatenate([ba, jnp.zeros((1, hp - num_heads), ba.dtype)], 1)

    # Pad rows to a multiple of the row tile; pad rows go to a reserved group.
    row = row.astype(jnp.int32)
    if n_pad != n:
        x = jnp.concatenate([x, jnp.zeros((n_pad - n, d), x.dtype)], 0)
        row = jnp.concatenate([row, jnp.full((n_pad - n,), num_groups, jnp.int32)], 0)

    row_lane = row.reshape(num_tiles, 1, tm)        # lane-dense per-tile ids (pass 1)
    row_col = row.reshape(n_pad, 1)                 # sublane-oriented ids   (pass 2)

    def replicated(shape):
        nd = len(shape)
        return pl.BlockSpec(shape, lambda *_: (0,) * nd)

    parallel = pltpu.CompilerParams(dimension_semantics=("parallel",))

    # ---- pass 1: scores + per-tile partial group sums -----------------------
    scores = functools.partial(_scores_kernel, float(temperature), compute_dtype)
    e, psums = pl.pallas_call(
        scores,
        out_shape=(jax.ShapeDtypeStruct((n_pad, hp), jnp.float32),
                   jax.ShapeDtypeStruct((num_tiles, gp, hp), jnp.float32)),
        grid=(num_tiles,),
        in_specs=[
            pl.BlockSpec((tm, d), lambda i: (i, 0)),        # x row tile
            pl.BlockSpec((1, 1, tm), lambda i: (i, 0, 0)),  # row ids (lane-dense)
            replicated((d, h1)), replicated((1, h1)),       # fc1
            replicated((h1, d)), replicated((1, d)),        # fc2
            replicated((1, d)), replicated((1, d)),         # layernorm gamma/beta
            replicated((d, hp)), replicated((1, hp)),       # fc_att
        ],
        out_specs=(pl.BlockSpec((tm, hp), lambda i: (i, 0)),
                   pl.BlockSpec((1, gp, hp), lambda i: (i, 0, 0))),
        compiler_params=parallel,
    )(x, row_lane, w1, b1_eff, params["w2"], params["b2"],
      params["ln_g"], params["ln_b"], wa, ba)

    # Tiny cross-tile reduction -> per-group softmax denominators [GP, HP].
    denom = jnp.sum(psums, axis=0)

    # ---- pass 2: gather denominators per row and normalize ------------------
    norm = pl.pallas_call(
        _normalize_kernel,
        out_shape=jax.ShapeDtypeStruct((n_pad, hp), jnp.float32),
        grid=(num_tiles,),
        in_specs=[
            pl.BlockSpec((tm, hp), lambda i: (i, 0)),       # e row tile
            pl.BlockSpec((tm, 1), lambda i: (i, 0)),        # row ids (sublane)
            replicated((gp, hp)),                           # group denominators
        ],
        out_specs=pl.BlockSpec((tm, hp), lambda i: (i, 0)),
        compiler_params=parallel,
    )(e, row_col, denom)

    # Head mean over the real heads (kernel output stays [N, HP]; this avoids a
    # lane-width-1 store inside the kernel).
    return jnp.mean(norm[:n, :num_heads], axis=1, keepdims=True)


# ----------------------------------------------------------------------------
# Pure NumPy reference (mirrors the PyTorch forward, incl. per-group loop)
# ----------------------------------------------------------------------------
def reference_forward(x, row, alpha, params, temperature=1.0):
    x = np.asarray(x, np.float32)
    n = x.shape[0]
    a = 0.0 if alpha is None else float(alpha)
    x_alpha = np.concatenate([x, np.full((n, 1), a, np.float32)], axis=1)
    h = np.maximum(x_alpha @ np.asarray(params["w1"]) + np.asarray(params["b1"]), 0.0)
    h = np.maximum(h @ np.asarray(params["w2"]) + np.asarray(params["b2"]), 0.0)
    mean = h.mean(-1, keepdims=True)
    var = ((h - mean) ** 2).mean(-1, keepdims=True)
    h = (h - mean) / np.sqrt(var + 1e-5)
    h = h * np.asarray(params["ln_g"]) + np.asarray(params["ln_b"])
    raw = h @ np.asarray(params["wa"]) + np.asarray(params["ba"])
    s = 1.0 / (1.0 + np.exp(-raw))
    row = np.asarray(row)
    norm = np.zeros_like(s)
    for g in np.unique(row):
        m = row == g
        z = s[m] / temperature
        z = z - z.max(axis=0, keepdims=True)
        ez = np.exp(z)
        norm[m] = ez / ez.sum(axis=0, keepdims=True)
    return norm.mean(axis=1, keepdims=True)


# ----------------------------------------------------------------------------
# Main
# ----------------------------------------------------------------------------
if __name__ == "__main__":
    N = 16            # number of edges / rows
    INPUT_DIM = 32
    HIDDEN_DIM = 64
    NUM_HEADS = 4
    NUM_GROUPS = 5
    TEMPERATURE = 0.5

    key = jax.random.PRNGKey(0)
    ks = jax.random.split(key, 8)

    # Deterministic synthetic parameters (weights stored as [in, out]).
    params = {
        "w1": jax.random.normal(ks[0], (INPUT_DIM + 1, HIDDEN_DIM), jnp.float32) * 0.1,
        "b1": jax.random.normal(ks[1], (1, HIDDEN_DIM), jnp.float32) * 0.01,
        "w2": jax.random.normal(ks[2], (HIDDEN_DIM, INPUT_DIM), jnp.float32) * 0.1,
        "b2": jax.random.normal(ks[3], (1, INPUT_DIM), jnp.float32) * 0.01,
        "ln_g": jnp.ones((1, INPUT_DIM), jnp.float32),
        "ln_b": jnp.zeros((1, INPUT_DIM), jnp.float32),
        "wa": jax.random.normal(ks[4], (INPUT_DIM, NUM_HEADS), jnp.float32) * 0.1,
        "ba": jax.random.normal(ks[5], (1, NUM_HEADS), jnp.float32) * 0.01,
    }

    x = jax.random.normal(ks[6], (N, INPUT_DIM), jnp.float32)
    # Group ids for the group-wise softmax (like edge "row" indices).
    row = jnp.array([0, 0, 0, 1, 1, 2, 2, 2, 2, 3, 3, 3, 3, 3, 4, 4], jnp.int32)
    alpha = 0.7  # global information scalar

    # block_rows=8 gives a 2-step grid at this toy size (production: 512-1024).
    fwd = jax.jit(functools.partial(
        enhanced_attention_forward,
        num_groups=NUM_GROUPS, temperature=TEMPERATURE, block_rows=8))
    out = jax.block_until_ready(fwd(x, row, alpha, params))

    ref = reference_forward(np.asarray(x), np.asarray(row), alpha, params, TEMPERATURE)
    np.testing.assert_allclose(np.asarray(out), ref, rtol=5e-4, atol=1e-5)

    # bf16 matmul operands (v6e / v7x path), f32 accumulation — loose sanity check.
    out_bf16 = jax.block_until_ready(
        enhanced_attention_forward(
            x, row, alpha, params, num_groups=NUM_GROUPS,
            temperature=TEMPERATURE, block_rows=8, compute_dtype=jnp.bfloat16))
    np.testing.assert_allclose(np.asarray(out_bf16), ref, rtol=0.0, atol=5e-2)

    print("KERNEL_OK")
</pallas_src>

<mosaic_0001>
module attributes {stable_mosaic.version = 11 : i64} {
  func.func @_normalize_kernel(%arg0: i32, %arg1: memref<8x8xf32, #tpu.memory_space<vmem>>, %arg2: memref<8x1xi32, #tpu.memory_space<vmem>>, %arg3: memref<8x8xf32, #tpu.memory_space<vmem>>, %arg4: memref<8x8xf32, #tpu.memory_space<vmem>>) attributes {dimension_semantics = [#tpu.dimension_semantics<parallel>], iteration_bounds = array<i64: 2>, scalar_prefetch = 0 : i64, scratch_operands = 0 : i64, tpu.core_type = #tpu.core_type<tc>, window_params = [{transform_indices = @transform_0, window_bounds = array<i64: 8, 8>}, {transform_indices = @transform_1, window_bounds = array<i64: 8, 1>}, {pipeline_mode = #tpu.pipeline_mode<synchronous>, transform_indices = @transform_2, window_bounds = array<i64: 8, 8>}, {transform_indices = @transform_3, window_bounds = array<i64: 8, 8>}]} {
    %c0 = arith.constant 0 : index
    %c0_0 = arith.constant 0 : index
    %0 = vector.load %arg1[%c0, %c0_0] : memref<8x8xf32, #tpu.memory_space<vmem>>, vector<8x8xf32>
    %1 = tpu.iota {dimensions = array<i32: 1>} : vector<8x8xi32>
    %c0_1 = arith.constant 0 : index
    %c0_2 = arith.constant 0 : index
    %2 = vector.load %arg2[%c0_1, %c0_2] : memref<8x1xi32, #tpu.memory_space<vmem>>, vector<8x1xi32>
    %3 = vector.broadcast %2 : vector<8x1xi32> to vector<8x8xi32>
    %4 = arith.cmpi eq, %3, %1 : vector<8x8xi32>
    %5 = arith.extui %4 : vector<8x8xi1> to vector<8x8xi32>
    %6 = arith.sitofp %5 : vector<8x8xi32> to vector<8x8xf32>
    %c0_3 = arith.constant 0 : index
    %c0_4 = arith.constant 0 : index
    %7 = vector.load %arg3[%c0_3, %c0_4] : memref<8x8xf32, #tpu.memory_space<vmem>>, vector<8x8xf32>
    %cst = arith.constant dense<0.000000e+00> : vector<8x8xf32>
    %8 = tpu.matmul %6, %7, %cst {dimension_numbers = #tpu.dot_dimension_numbers<[1], [0], [0], [1], [0, 0, 1, 1], [], []>} : vector<8x8xf32>, vector<8x8xf32>, vector<8x8xf32> -> vector<8x8xf32>
    %9 = arith.divf %0, %8 : vector<8x8xf32>
    %c0_5 = arith.constant 0 : index
    %c0_6 = arith.constant 0 : index
    %10 = vector.load %arg4[%c0_5, %c0_6] : memref<8x8xf32, #tpu.memory_space<vmem>>, vector<8x8xf32>
    tpu.vector_store %arg4[%c0_5, %c0_6], %9 {strides = array<i32>} : memref<8x8xf32, #tpu.memory_space<vmem>>, vector<8x8xf32>,
    return
  }
  func.func @transform_0(%arg0: i32) -> (i32, i32) {
    %c0_i32 = arith.constant 0 : i32
    %c0_i32_0 = arith.constant 0 : i32
    return %arg0, %c0_i32 : i32, i32
  }
  func.func @transform_1(%arg0: i32) -> (i32, i32) {
    %c0_i32 = arith.constant 0 : i32
    %c0_i32_0 = arith.constant 0 : i32
    return %arg0, %c0_i32 : i32, i32
  }
  func.func @transform_2(%arg0: i32) -> (i32, i32) {
    %c0_i32 = arith.constant 0 : i32
    %c0_i32_0 = arith.constant 0 : i32
    %c0_i32_1 = arith.constant 0 : i32
    return %c0_i32, %c0_i32_0 : i32, i32
  }
  func.func @transform_3(%arg0: i32) -> (i32, i32) {
    %c0_i32 = arith.constant 0 : i32
    %c0_i32_0 = arith.constant 0 : i32
    return %arg0, %c0_i32 : i32, i32
  }
}

module attributes {stable_mosaic.version = 11 : i64} {
  func.func @_scores_kernel(%arg0: i32, %arg1: memref<8x32xf32, #tpu.memory_space<vmem>>, %arg2: memref<1x1x8xi32, #tpu.memory_space<vmem>>, %arg3: memref<32x64xf32, #tpu.memory_space<vmem>>, %arg4: memref<1x64xf32, #tpu.memory_space<vmem>>, %arg5: memref<64x32xf32, #tpu.memory_space<vmem>>, %arg6: memref<1x32xf32, #tpu.memory_space<vmem>>, %arg7: memref<1x32xf32, #tpu.memory_space<vmem>>, %arg8: memref<1x32xf32, #tpu.memory_space<vmem>>, %arg9: memref<32x8xf32, #tpu.memory_space<vmem>>, %arg10: memref<1x8xf32, #tpu.memory_space<vmem>>, %arg11: memref<8x8xf32, #tpu.memory_space<vmem>>, %arg12: memref<1x8x8xf32, #tpu.memory_space<vmem>>) attributes {dimension_semantics = [#tpu.dimension_semantics<parallel>], iteration_bounds = array<i64: 2>, scalar_prefetch = 0 : i64, scratch_operands = 0 : i64, tpu.core_type = #tpu.core_type<tc>, window_params = [{transform_indices = @transform_0, window_bounds = array<i64: 8, 32>}, {transform_indices = @transform_1, window_bounds = array<i64: 1, 1, 8>}, {pipeline_mode = #tpu.pipeline_mode<synchronous>, transform_indices = @transform_2, window_bounds = array<i64: 32, 64>}, {pipeline_mode = #tpu.pipeline_mode<synchronous>, transform_indices = @transform_3, window_bounds = array<i64: 1, 64>}, {pipeline_mode = #tpu.pipeline_mode<synchronous>, transform_indices = @transform_4, window_bounds = array<i64: 64, 32>}, {pipeline_mode = #tpu.pipeline_mode<synchronous>, transform_indices = @transform_5, window_bounds = array<i64: 1, 32>}, {pipeline_mode = #tpu.pipeline_mode<synchronous>, transform_indices = @transform_6, window_bounds = array<i64: 1, 32>}, {pipeline_mode = #tpu.pipeline_mode<synchronous>, transform_indices = @transform_7, window_bounds = array<i64: 1, 32>}, {pipeline_mode = #tpu.pipeline_mode<synchronous>, transform_indices = @transform_8, window_bounds = array<i64: 32, 8>}, {pipeline_mode = #tpu.pipeline_mode<synchronous>, transform_indices = @transform_9, window_bounds = array<i64: 1, 8>}, {transform_indices = @transform_10, window_bounds = array<i64: 8, 8>}, {transform_indices = @transform_11, window_bounds = array<i64: 1, 8, 8>}]} {
    %c0 = arith.constant 0 : index
    %c0_0 = arith.constant 0 : index
    %0 = vector.load %arg1[%c0, %c0_0] : memref<8x32xf32, #tpu.memory_space<vmem>>, vector<8x32xf32>
    %c0_1 = arith.constant 0 : index
    %c0_2 = arith.constant 0 : index
    %1 = vector.load %arg3[%c0_1, %c0_2] : memref<32x64xf32, #tpu.memory_space<vmem>>, vector<32x64xf32>
    %cst = arith.constant dense<0.000000e+00> : vector<8x64xf32>
    %2 = tpu.matmul %0, %1, %cst {dimension_numbers = #tpu.dot_dimension_numbers<[1], [0], [0], [1], [0, 0, 1, 1], [], []>} : vector<8x32xf32>, vector<32x64xf32>, vector<8x64xf32> -> vector<8x64xf32>
    %c0_3 = arith.constant 0 : index
    %c0_4 = arith.constant 0 : index
    %3 = vector.load %arg4[%c0_3, %c0_4] : memref<1x64xf32, #tpu.memory_space<vmem>>, vector<1x64xf32>
    %4 = vector.broadcast %3 : vector<1x64xf32> to vector<8x64xf32>
    %5 = arith.addf %2, %4 : vector<8x64xf32>
    %cst_5 = arith.constant 0.000000e+00 : f32
    %6 = vector.broadcast %cst_5 : f32 to vector<8x64xf32>
    %7 = arith.maximumf %5, %6 : vector<8x64xf32>
    %c0_6 = arith.constant 0 : index
    %c0_7 = arith.constant 0 : index
    %8 = vector.load %arg5[%c0_6, %c0_7] : memref<64x32xf32, #tpu.memory_space<vmem>>, vector<64x32xf32>
    %cst_8 = arith.constant dense<0.000000e+00> : vector<8x32xf32>
    %9 = tpu.matmul %7, %8, %cst_8 {dimension_numbers = #tpu.dot_dimension_numbers<[1], [0], [0], [1], [0, 0, 1, 1], [], []>} : vector<8x64xf32>, vector<64x32xf32>, vector<8x32xf32> -> vector<8x32xf32>
    %c0_9 = arith.constant 0 : index
    %c0_10 = arith.constant 0 : index
    %10 = vector.load %arg6[%c0_9, %c0_10] : memref<1x32xf32, #tpu.memory_space<vmem>>, vector<1x32xf32>
    %11 = vector.broadcast %10 : vector<1x32xf32> to vector<8x32xf32>
    %12 = arith.addf %9, %11 : vector<8x32xf32>
    %cst_11 = arith.constant 0.000000e+00 : f32
    %13 = vector.broadcast %cst_11 : f32 to vector<8x32xf32>
    %14 = arith.maximumf %12, %13 : vector<8x32xf32>
    %cst_12 = arith.constant dense<0.000000e+00> : vector<8xf32>
    %15 = vector.multi_reduction <add>, %14, %cst_12 [1] : vector<8x32xf32> to vector<8xf32>
    %16 = vector.shape_cast %15 : vector<8xf32> to vector<8x1xf32>
    %cst_13 = arith.constant 3.200000e+01 : f32
    %17 = vector.broadcast %cst_13 : f32 to vector<8x1xf32>
    %18 = arith.divf %16, %17 : vector<8x1xf32>
    %19 = arith.mulf %14, %14 : vector<8x32xf32>
    %cst_14 = arith.constant dense<0.000000e+00> : vector<8xf32>
    %20 = vector.multi_reduction <add>, %19, %cst_14 [1] : vector<8x32xf32> to vector<8xf32>
    %21 = vector.shape_cast %20 : vector<8xf32> to vector<8x1xf32>
    %cst_15 = arith.constant 3.200000e+01 : f32
    %22 = vector.broadcast %cst_15 : f32 to vector<8x1xf32>
    %23 = arith.divf %21, %22 : vector<8x1xf32>
    %24 = arith.mulf %18, %18 : vector<8x1xf32>
    %25 = arith.subf %23, %24 : vector<8x1xf32>
    %26 = vector.broadcast %18 : vector<8x1xf32> to vector<8x32xf32>
    %27 = arith.subf %14, %26 : vector<8x32xf32>
    %cst_16 = arith.constant 9.99999974E-6 : f32
    %28 = vector.broadcast %cst_16 : f32 to vector<8x1xf32>
    %29 = arith.addf %25, %28 : vector<8x1xf32>
    %30 = math.rsqrt %29 : vector<8x1xf32>
    %31 = vector.broadcast %30 : vector<8x1xf32> to vector<8x32xf32>
    %32 = arith.mulf %27, %31 : vector<8x32xf32>
    %c0_17 = arith.constant 0 : index
    %c0_18 = arith.constant 0 : index
    %33 = vector.load %arg7[%c0_17, %c0_18] : memref<1x32xf32, #tpu.memory_space<vmem>>, vector<1x32xf32>
    %34 = vector.broadcast %33 : vector<1x32xf32> to vector<8x32xf32>
    %35 = arith.mulf %32, %34 : vector<8x32xf32>
    %c0_19 = arith.constant 0 : index
    %c0_20 = arith.constant 0 : index
    %36 = vector.load %arg8[%c0_19, %c0_20] : memref<1x32xf32, #tpu.memory_space<vmem>>, vector<1x32xf32>
    %37 = vector.broadcast %36 : vector<1x32xf32> to vector<8x32xf32>
    %38 = arith.addf %35, %37 : vector<8x32xf32>
    %c0_21 = arith.constant 0 : index
    %c0_22 = arith.constant 0 : index
    %39 = vector.load %arg9[%c0_21, %c0_22] : memref<32x8xf32, #tpu.memory_space<vmem>>, vector<32x8xf32>
    %cst_23 = arith.constant dense<0.000000e+00> : vector<8x8xf32>
    %40 = tpu.matmul %38, %39, %cst_23 {dimension_numbers = #tpu.dot_dimension_numbers<[1], [0], [0], [1], [0, 0, 1, 1], [], []>} : vector<8x32xf32>, vector<32x8xf32>, vector<8x8xf32> -> vector<8x8xf32>
    %c0_24 = arith.constant 0 : index
    %c0_25 = arith.constant 0 : index
    %41 = vector.load %arg10[%c0_24, %c0_25] : memref<1x8xf32, #tpu.memory_space<vmem>>, vector<1x8xf32>
    %42 = vector.broadcast %41 : vector<1x8xf32> to vector<8x8xf32>
    %43 = arith.addf %40, %42 : vector<8x8xf32>
    %cst_26 = arith.constant 0.000000e+00 : f32
    %44 = vector.broadcast %cst_26 : f32 to vector<8x8xf32>
    %45 = arith.subf %44, %43 : vector<8x8xf32>
    %46 = math.exp %45 : vector<8x8xf32>
    %cst_27 = arith.constant 1.000000e+00 : f32
    %47 = vector.broadcast %cst_27 : f32 to vector<8x8xf32>
    %48 = arith.addf %47, %46 : vector<8x8xf32>
    %cst_28 = arith.constant 1.000000e+00 : f32
    %49 = vector.broadcast %cst_28 : f32 to vector<8x8xf32>
    %50 = arith.divf %49, %48 : vector<8x8xf32>
    %cst_29 = arith.constant 1.000000e+00 : f32
    %51 = vector.broadcast %cst_29 : f32 to vector<8x8xf32>
    %52 = arith.subf %50, %51 : vector<8x8xf32>
    %cst_30 = arith.constant 2.000000e+00 : f32
    %53 = vector.broadcast %cst_30 : f32 to vector<8x8xf32>
    %54 = arith.mulf %52, %53 : vector<8x8xf32>
    %55 = math.exp %54 : vector<8x8xf32>
    %c0_31 = arith.constant 0 : index
    %c0_32 = arith.constant 0 : index
    %56 = vector.load %arg11[%c0_31, %c0_32] : memref<8x8xf32, #tpu.memory_space<vmem>>, vector<8x8xf32>
    tpu.vector_store %arg11[%c0_31, %c0_32], %55 {strides = array<i32>} : memref<8x8xf32, #tpu.memory_space<vmem>>, vector<8x8xf32>,
    %57 = tpu.iota {dimensions = array<i32: 0>} : vector<8x8xi32>
    %c0_33 = arith.constant 0 : index
    %c0_34 = arith.constant 0 : index
    %c0_35 = arith.constant 0 : index
    %58 = vector.load %arg2[%c0_33, %c0_34, %c0_35] : memref<1x1x8xi32, #tpu.memory_space<vmem>>, vector<1x1x8xi32>
    %59 = vector.shape_cast %58 : vector<1x1x8xi32> to vector<1x8xi32>
    %60 = vector.broadcast %59 : vector<1x8xi32> to vector<8x8xi32>
    %61 = arith.cmpi eq, %60, %57 : vector<8x8xi32>
    %62 = arith.extui %61 : vector<8x8xi1> to vector<8x8xi32>
    %63 = arith.sitofp %62 : vector<8x8xi32> to vector<8x8xf32>
    %cst_36 = arith.constant dense<0.000000e+00> : vector<8x8xf32>
    %64 = tpu.matmul %63, %55, %cst_36 {dimension_numbers = #tpu.dot_dimension_numbers<[1], [0], [0], [1], [0, 0, 1, 1], [], []>} : vector<8x8xf32>, vector<8x8xf32>, vector<8x8xf32> -> vector<8x8xf32>
    %c0_37 = arith.constant 0 : index
    %c0_38 = arith.constant 0 : index
    %c0_39 = arith.constant 0 : index
    %65 = vector.load %arg12[%c0_37, %c0_38, %c0_39] : memref<1x8x8xf32, #tpu.memory_space<vmem>>, vector<1x8x8xf32>
    %66 = vector.shape_cast %65 : vector<1x8x8xf32> to vector<8x8xf32>
    %67 = vector.shape_cast %64 : vector<8x8xf32> to vector<1x8x8xf32>
    tpu.vector_store %arg12[%c0_37, %c0_38, %c0_39], %67 {strides = array<i32>} : memref<1x8x8xf32, #tpu.memory_space<vmem>>, vector<1x8x8xf32>,
    return
  }
  func.func @transform_0(%arg0: i32) -> (i32, i32) {
    %c0_i32 = arith.constant 0 : i32
    %c0_i32_0 = arith.constant 0 : i32
    return %arg0, %c0_i32 : i32, i32
  }
  func.func @transform_1(%arg0: i32) -> (i32, i32, i32) {
    %c0_i32 = arith.constant 0 : i32
    %c0_i32_0 = arith.constant 0 : i32
    %c0_i32_1 = arith.constant 0 : i32
    return %arg0, %c0_i32, %c0_i32_0 : i32, i32, i32
  }
  func.func @transform_2(%arg0: i32) -> (i32, i32) {
    %c0_i32 = arith.constant 0 : i32
    %c0_i32_0 = arith.constant 0 : i32
    %c0_i32_1 = arith.constant 0 : i32
    return %c0_i32, %c0_i32_0 : i32, i32
  }
  func.func @transform_3(%arg0: i32) -> (i32, i32) {
    %c0_i32 = arith.constant 0 : i32
    %c0_i32_0 = arith.constant 0 : i32
    %c0_i32_1 = arith.constant 0 : i32
    return %c0_i32, %c0_i32_0 : i32, i32
  }
  func.func @transform_4(%arg0: i32) -> (i32, i32) {
    %c0_i32 = arith.constant 0 : i32
    %c0_i32_0 = arith.constant 0 : i32
    %c0_i32_1 = arith.constant 0 : i32
    return %c0_i32, %c0_i32_0 : i32, i32
  }
  func.func @transform_5(%arg0: i32) -> (i32, i32) {
    %c0_i32 = arith.constant 0 : i32
    %c0_i32_0 = arith.constant 0 : i32
    %c0_i32_1 = arith.constant 0 : i32
    return %c0_i32, %c0_i32_0 : i32, i32
  }
  func.func @transform_6(%arg0: i32) -> (i32, i32) {
    %c0_i32 = arith.constant 0 : i32
    %c0_i32_0 = arith.constant 0 : i32
    %c0_i32_1 = arith.constant 0 : i32
    return %c0_i32, %c0_i32_0 : i32, i32
  }
  func.func @transform_7(%arg0: i32) -> (i32, i32) {
    %c0_i32 = arith.constant 0 : i32
    %c0_i32_0 = arith.constant 0 : i32
    %c0_i32_1 = arith.constant 0 : i32
    return %c0_i32, %c0_i32_0 : i32, i32
  }
  func.func @transform_8(%arg0: i32) -> (i32, i32) {
    %c0_i32 = arith.constant 0 : i32
    %c0_i32_0 = arith.constant 0 : i32
    %c0_i32_1 = arith.constant 0 : i32
    return %c0_i32, %c0_i32_0 : i32, i32
  }
  func.func @transform_9(%arg0: i32) -> (i32, i32) {
    %c0_i32 = arith.constant 0 : i32
    %c0_i32_0 = arith.constant 0 : i32
    %c0_i32_1 = arith.constant 0 : i32
    return %c0_i32, %c0_i32_0 : i32, i32
  }
  func.func @transform_10(%arg0: i32) -> (i32, i32) {
    %c0_i32 = arith.constant 0 : i32
    %c0_i32_0 = arith.constant 0 : i32
    return %arg0, %c0_i32 : i32, i32
  }
  func.func @transform_11(%arg0: i32) -> (i32, i32, i32) {
    %c0_i32 = arith.constant 0 : i32
    %c0_i32_0 = arith.constant 0 : i32
    %c0_i32_1 = arith.constant 0 : i32
    return %arg0, %c0_i32, %c0_i32_0 : i32, i32, i32
  }
}

</mosaic_0001>

<llo_original>
// kernel: enhanced_attention_forward.3
$region0: #{enhanced_attention_forward.3}
  #allocation0 [shape = 'u32[]', space=smem, size = 0x4, offset = 0x4, fixed_abs, tag = 'smem constant byte address 0x4 - core index']
  #allocation1 [shape = 'u32[144,128]{1,0:T(1,128)}', space=vmem, size = 0x12000, scoped, tag = 'internal scratch']
  %s0 = inlined_call_operand.vmem [shape: f32[16,8], index: 0, kind: input, shape index: {}]
  %s1 = inlined_call_operand.vmem [shape: s32[16,1], index: 1, kind: input, shape index: {}]
  %s2 = inlined_call_operand.vmem [shape: f32[8,8], index: 2, kind: input, shape index: {}]
  %s3 = inlined_call_operand.vmem [shape: f32[16,8], index: 3, kind: output, shape index: {}]
  %s4 = sld [smem:[#allocation0]]
  $region45: #{enhanced_attention_forward.3} parent=0
    _
  %s6 = ssub.s32 1, %s4
  %s7 = scalar_select 0, %s6, %s4
  loop: start=0, step=1, limit=4
  $region2: #{enhanced_attention_forward.3} parent=0 // loop_pre_header
    _
  $region3: #{enhanced_attention_forward.3} parent=0 // loop_header
    %s9 = sphi 0, %s13
    %p10 = scmp.ge.s32.totalorder %s9, 4
    %s19 = sphi 0, %s21
    %s22 = sphi 0, %s19
    %s23 = sphi 0, %s22
    %s39 = sphi 0, %s23
    %s45 = sphi 0, %s47
    %s48 = sphi 0, %s45
    %s49 = sphi 0, %s48
    %s65 = sphi 0, %s49
    %s69 = sphi 0, %s69
    %s71 = sphi 0, %s69
    %s72 = sphi 0, %s71
    %s86 = sphi 0, %s72
    %s92 = sphi 0, %s94
    %s95 = sphi 0, %s92
    %s96 = sphi 0, %s95
    %s112 = sphi 0, %s96
  $region4: #{enhanced_attention_forward.3} parent=0 // loop_header_branch
    %12 = sbr.rel (%p10) target = $region8
  $region5: #{enhanced_attention_forward.3} parent=0 // loop_body
    %s14 = ssub.s32 %s9, 1
    %s15 = ssub.s32 %s9, 2
    %s16 = sadd.s32 %s9, 1
    %s17 = ssub.s32 %s9, %s16
    %p18 = scmp.eq.s32.totalorder %s17, 0
    %s20 = sadd.s32 %s19, 1
    %s21 = scalar_select %p18, %s19, %s20
    %p24 = pneg %p18
    %p25 = scmp.eq.s32.totalorder %s9, 1
    %p26 = por %p24, %p25
    %p27 = scmp.ne.s32.totalorder %s19, %s22
    %p28 = scmp.eq.s32.totalorder %s9, 0
    %p29 = por %p27, %p28
    %p30 = scmp.ne.s32.totalorder %s19, %s22
    %p31 = scmp.eq.s32.totalorder %s14, 1
    %p32 = por %p30, %p31
    %p33 = scmp.ne.s32.totalorder %s22, %s23
    %p34 = scmp.eq.s32.totalorder %s14, 0
    %p35 = por %p33, %p34
    %p36 = scmp.ne.s32.totalorder %s22, %s23
    %p37 = scmp.eq.s32.totalorder %s15, 1
    %p38 = por %p36, %p37
    %p40 = scmp.ne.s32.totalorder %s23, %s39
    %p41 = scmp.eq.s32.totalorder %s15, 0
    %p42 = por %p40, %p41
    %s43 = ssub.s32 %s9, %s16
    %p44 = scmp.eq.s32.totalorder %s43, 0
    %s46 = sadd.s32 %s45, 1
    %s47 = scalar_select %p44, %s45, %s46
    %p50 = pneg %p44
    %p51 = scmp.eq.s32.totalorder %s9, 1
    %p52 = por %p50, %p51
    %p53 = scmp.ne.s32.totalorder %s45, %s48
    %p54 = scmp.eq.s32.totalorder %s9, 0
    %p55 = por %p53, %p54
    %p56 = scmp.ne.s32.totalorder %s45, %s48
    %p57 = scmp.eq.s32.totalorder %s14, 1
    %p58 = por %p56, %p57
    %p59 = scmp.ne.s32.totalorder %s48, %s49
    %p60 = scmp.eq.s32.totalorder %s14, 0
    %p61 = por %p59, %p60
    %p62 = scmp.ne.s32.totalorder %s48, %s49
    %p63 = scmp.eq.s32.totalorder %s15, 1
    %p64 = por %p62, %p63
    %p66 = scmp.ne.s32.totalorder %s49, %s65
    %p67 = scmp.eq.s32.totalorder %s15, 0
    %p68 = por %p66, %p67
    %s70 = sadd.s32 %s69, 1
    %p73 = scmp.eq.s32.totalorder %s9, 1
    %p74 = scmp.ne.s32.totalorder %s69, %s71
    %p75 = scmp.eq.s32.totalorder %s9, 0
    %p76 = por %p74, %p75
    %p77 = scmp.ne.s32.totalorder %s69, %s71
    %p78 = scmp.eq.s32.totalorder %s14, 1
    %p79 = por %p77, %p78
    %p80 = scmp.ne.s32.totalorder %s71, %s72
    %p81 = scmp.eq.s32.totalorder %s14, 0
    %p82 = por %p80, %p81
    %p83 = scmp.ne.s32.totalorder %s71, %s72
    %p84 = scmp.eq.s32.totalorder %s15, 1
    %p85 = por %p83, %p84
    %p87 = scmp.ne.s32.totalorder %s72, %s86
    %p88 = scmp.eq.s32.totalorder %s15, 0
    %p89 = por %p87, %p88
    %s90 = ssub.s32 %s9, %s16
    %p91 = scmp.eq.s32.totalorder %s90, 0
    %s93 = sadd.s32 %s92, 1
    %s94 = scalar_select %p91, %s92, %s93
    %p97 = pneg %p91
    %p98 = scmp.eq.s32.totalorder %s9, 1
    %p99 = por %p97, %p98
    %p100 = scmp.ne.s32.totalorder %s92, %s95
    %p101 = scmp.eq.s32.totalorder %s9, 0
    %p102 = por %p100, %p101
    %p103 = scmp.ne.s32.totalorder %s92, %s95
    %p104 = scmp.eq.s32.totalorder %s14, 1
    %p105 = por %p103, %p104
    %p106 = scmp.ne.s32.totalorder %s95, %s96
    %p107 = scmp.eq.s32.totalorder %s14, 0
    %p108 = por %p106, %p107
    %p109 = scmp.ne.s32.totalorder %s95, %s96
    %p110 = scmp.eq.s32.totalorder %s15, 1
    %p111 = por %p109, %p110
    %p113 = scmp.ne.s32.totalorder %s96, %s112
    %p114 = scmp.eq.s32.totalorder %s15, 0
    %p115 = por %p113, %p114
    %p116 = scmp.le.s32.totalorder 1, %s9
    %p117 = scmp.lt.s32.totalorder %s9, 3
    %p118 = pnand %p116, %p117
    %p119 = pneg %p118
    // Predicated region
    $region9: #{enhanced_attention_forward.3} parent=5 // pred_check
      _
    $region10: #{enhanced_attention_forward.3} parent=5 // pred_check_branch
      %121 = sbr.rel (%p118) target = $region12
    $region11: #{enhanced_attention_forward.3} parent=5 // pred_region
      %s122 = ssub.s32 %s9, 1
      // Predicated region
      $region13: #{enhanced_attention_forward.3} parent=11 // pred_check
        %p123 = pneg %p82
      $region14: #{enhanced_attention_forward.3} parent=11 // pred_check_branch
        %125 = sbr.rel (%p123) target = $region16
      $region15: #{enhanced_attention_forward.3} parent=11 // pred_region
        _
      $region16: #{enhanced_attention_forward.3} parent=11 // pred_fallthru
        _
    $region12: #{enhanced_attention_forward.3} parent=5 // pred_fallthru
      _
    %p126 = scmp.lt.s32.totalorder %s9, 2
    // Predicated region
    $region17: #{enhanced_attention_forward.3} parent=5 // pred_check
      %p127 = pneg %p126
    $region18: #{enhanced_attention_forward.3} parent=5 // pred_check_branch
      %129 = sbr.rel (%p127) target = $region20
    $region19: #{enhanced_attention_forward.3} parent=5 // pred_region
      // Predicated region
      $region21: #{enhanced_attention_forward.3} parent=19 // pred_check
        %p130 = pneg %p29
      $region22: #{enhanced_attention_forward.3} parent=19 // pred_check_branch
        %132 = sbr.rel (%p130) target = $region24
      $region23: #{enhanced_attention_forward.3} parent=19 // pred_region
        %p133 = scmp.lt.s32.totalorder %s9, 1
        %s134 = scalar_select %p133, %s9, 1
        %s135 = smul.addr %s134, 8
        %s136 = scalar_lea.vmem %s0, %s135
      $region24: #{enhanced_attention_forward.3} parent=19 // pred_fallthru
        _
      // Predicated region
      $region25: #{enhanced_attention_forward.3} parent=19 // pred_check
        %p137 = pneg %p55
      $region26: #{enhanced_attention_forward.3} parent=19 // pred_check_branch
        %139 = sbr.rel (%p137) target = $region28
      $region27: #{enhanced_attention_forward.3} parent=19 // pred_region
        %p140 = scmp.lt.s32.totalorder %s9, 1
        %s141 = scalar_select %p140, %s9, 1
        %s142 = smul.addr %s141, 8
        %s143 = scalar_lea.vmem %s1, %s142
      $region28: #{enhanced_attention_forward.3} parent=19 // pred_fallthru
        _
    $region20: #{enhanced_attention_forward.3} parent=5 // pred_fallthru
      _
    %p144 = scmp.le.s32.totalorder 1, %s9
    %p145 = scmp.lt.s32.totalorder %s9, 3
    %p146 = pnand %p144, %p145
    %p147 = pneg %p146
    // Predicated region
    $region29: #{enhanced_attention_forward.3} parent=5 // pred_check
      _
    $region30: #{enhanced_attention_forward.3} parent=5 // pred_check_branch
      %149 = sbr.rel (%p146) target = $region32
    $region31: #{enhanced_attention_forward.3} parent=5 // pred_region
      %s150 = ssub.s32 %s9, 1
      %p151 = scmp.lt.s32.totalorder %s14, 1
      %s152 = scalar_select %p151, %s14, 1
      %s153 = smul.addr %s152, 8
      %s154 = scalar_lea.vmem %s0, %s153
      %p155 = pneg %p35
      %p156 = pneg %p32
      %p157 = scmp.lt.s32.totalorder %s14, 1
      %s158 = scalar_select %p157, %s14, 1
      %s159 = smul.addr %s158, 8
      %s160 = scalar_lea.vmem %s1, %s159
      %p161 = pneg %p61
      %p162 = pneg %p58
      %p163 = pneg %p82
      %p164 = pneg %p79
      %p165 = pneg %p108
      %p166 = pneg %p105
      %p167 = scmp.lt.s32.totalorder %s14, 1
      %s168 = scalar_select %p167, %s14, 1
      %s169 = smul.addr %s168, 8
      %s170 = scalar_lea.vmem %s3, %s169
      %p171 = scmp.lt.s32.totalorder %s14, 1
      %s172 = scalar_select %p171, %s14, 1
      %s173 = smul.addr %s172, 8
      %s174 = scalar_lea.vmem %s0, %s173
      %p175 = scmp.lt.s32.totalorder %s14, 1
      %s176 = scalar_select %p175, %s14, 1
      %s177 = smul.addr %s176, 8
      %s178 = scalar_lea.vmem %s1, %s177
      %p179 = scmp.lt.s32.totalorder %s14, 1
      %s180 = scalar_select %p179, %s14, 1
      %s181 = smul.addr %s180, 8
      %s182 = scalar_lea.vmem %s3, %s181
      %v183 = vld [vmem:[%s174] sm:$0xff]
      %v184 = vlaneseq
      %v185 = vand.u32 %v184, 127
      %v186 = vld [vmem:[%s178] sm:$0xff]
      %187 = vset.pattern.permute.xlu0 0
      %188 = vperm.xlu0 %187, %v186
      %v189 = vpop.permute.xlu0 %188
      %vm190 = vcmp.eq.s32.totalorder %v189, %v185
      %v191 = vsel %vm190, 1, 0
      %v192 = vcvt.s32.f32 %v191
      %v193 = vld [vmem:[%s2] sm:$0xff]
      %vm194 = vcmask 64512
      %v196 = vsel %vm194, %v192, 0
      %198 = vmatprep.subr.mxu0 0.0
      %199 = vmatpush1.msra.mxu0 %v193
      %200 = vmatprep.subr.mxu0 0.0
      %201 = vmatpush1.msra.mxu0 0.0
      %202 = vmatprep.subr.mxu0 0.0
      %203 = vmatpush1.msra.mxu0 0.0
      %204 = vmatprep.subr.mxu0 0.0
      %205 = vmatpush1.msra.mxu0 0.0
      %206 = vmatprep.subr.mxu0 0.0
      %207 = vmatpush1.msra.mxu0 0.0
      %208 = vmatprep.subr.mxu0 0.0
      %209 = vmatpush1.msra.mxu0 0.0
      %210 = vmatprep.subr.mxu0 0.0
      %211 = vmatpush1.msra.mxu0 0.0
      %212 = vmatprep.subr.mxu0 0.0
      %213 = vmatpush1.msra.mxu0 0.0
      %214 = vmatprep.subr.mxu0 0.0
      %215 = vmatpush1.msra.mxu0 0.0
      %216 = vmatprep.subr.mxu0 0.0
      %217 = vmatpush1.msra.mxu0 0.0
      %218 = vmatprep.subr.mxu0 0.0
      %219 = vmatpush1.msra.mxu0 0.0
      %220 = vmatprep.subr.mxu0 0.0
      %221 = vmatpush1.msra.mxu0 0.0
      %222 = vmatprep.subr.mxu0 0.0
      %223 = vmatpush1.msra.mxu0 0.0
      %224 = vmatprep.subr.mxu0 0.0
      %225 = vmatpush1.msra.mxu0 0.0
      %226 = vmatprep.subr.mxu0 0.0
      %227 = vmatpush1.msra.mxu0 0.0
      %228 = vmatprep.subr.mxu0 0.0
      %229 = vmatpush1.msra.mxu0 0.0
      %230 = vmatprep.subr.mxu0 0.0
      %231 = vmatpush1.msra.mxu0 0.0
      %232 = vmatprep.subr.mxu0 0.0
      %233 = vmatpush1.msra.mxu0 0.0
      %234 = vmatprep.subr.mxu0 0.0
      %235 = vmatpush1.msra.mxu0 0.0
      %236 = vmatprep.subr.mxu0 0.0
      %237 = vmatpush1.msra.mxu0 0.0
      %238 = vmatprep.subr.mxu0 0.0
      %239 = vmatpush1.msra.mxu0 0.0
      %240 = vmatprep.subr.mxu0 0.0
      %241 = vmatpush1.msra.mxu0 0.0
      %242 = vmatprep.subr.mxu0 0.0
      %243 = vmatpush1.msra.mxu0 0.0
      %244 = vmatprep.subr.mxu0 0.0
      %245 = vmatpush1.msra.mxu0 0.0
      %246 = vmatprep.subr.mxu0 0.0
      %247 = vmatpush1.msra.mxu0 0.0
      %248 = vmatprep.subr.mxu0 0.0
      %249 = vmatpush1.msra.mxu0 0.0
      %250 = vmatprep.subr.mxu0 0.0
      %251 = vmatpush1.msra.mxu0 0.0
      %252 = vmatprep.subr.mxu0 0.0
      %253 = vmatpush1.msra.mxu0 0.0
      %254 = vmatprep.subr.mxu0 0.0
      %255 = vmatpush1.msra.mxu0 0.0
      %256 = vmatprep.subr.mxu0 0.0
      %257 = vmatpush1.msra.mxu0 0.0
      %258 = vmatprep.subr.mxu0 0.0
      %259 = vmatpush1.msra.mxu0 0.0
      %260 = vmatprep.subr.mxu0 0.0
      %261 = vmatpush1.msra.mxu0 0.0
      %262 = vmatprep.mubr.f32.mxu0 0.0
      %263 = vmatmul.mubr.f32.gmra.mrb[0].mxu0 %v196
      %v264 = vpop.f32.mrb[0].mxu0
      %v265 = vadd.f32 0.0, %v264
      %v266 = vpop.f32.mrb[0].mxu0
      %267 = vdwg.mxu0
      %v268 = vrcp.pop %v265
      %v269 = vmul.f32 %v183, %v268
      %270 = vst.msk [vmem:[%s182] sm:$0xff] %vm194, %v269
      %p271 = scmp.lt.s32.totalorder %s14, 1
      %s272 = scalar_select %p271, %s14, 1
      %s273 = smul.addr %s272, 8
      %s274 = scalar_lea.vmem %s3, %s273
      // Predicated region
      $region33: #{enhanced_attention_forward.3} parent=31 // pred_check
        %p275 = pneg %p105
      $region34: #{enhanced_attention_forward.3} parent=31 // pred_check_branch
        %277 = sbr.rel (%p275) target = $region36
      $region35: #{enhanced_attention_forward.3} parent=31 // pred_region
        _
      $region36: #{enhanced_attention_forward.3} parent=31 // pred_fallthru
        _
    $region32: #{enhanced_attention_forward.3} parent=5 // pred_fallthru
      _
    %p278 = scmp.le.s32.totalorder 2, %s9
    // Predicated region
    $region37: #{enhanced_attention_forward.3} parent=5 // pred_check
      %p279 = pneg %p278
    $region38: #{enhanced_attention_forward.3} parent=5 // pred_check_branch
      %281 = sbr.rel (%p279) target = $region40
    $region39: #{enhanced_attention_forward.3} parent=5 // pred_region
      %s282 = ssub.s32 %s9, 2
      // Predicated region
      $region41: #{enhanced_attention_forward.3} parent=39 // pred_check
        %p283 = pneg %p111
      $region42: #{enhanced_attention_forward.3} parent=39 // pred_check_branch
        %285 = sbr.rel (%p283) target = $region44
      $region43: #{enhanced_attention_forward.3} parent=39 // pred_region
        %p286 = scmp.lt.s32.totalorder %s15, 1
        %s287 = scalar_select %p286, %s15, 1
        %s288 = smul.addr %s287, 8
        %s289 = scalar_lea.vmem %s3, %s288
      $region44: #{enhanced_attention_forward.3} parent=39 // pred_fallthru
        _
    $region40: #{enhanced_attention_forward.3} parent=5 // pred_fallthru
      _
  $region6: #{enhanced_attention_forward.3} parent=0 // loop_footer
    %s13 = sadd.s32 1, %s9
  $region7: #{enhanced_attention_forward.3} parent=0 // loop_footer_branch
    %8 = sbr.rel target = $region3
  $region8: #{enhanced_attention_forward.3} parent=0 // loop_exit
    _

// kernel: enhanced_attention_forward.2
$region0: #{enhanced_attention_forward.2}
  #allocation0 [shape = 'u32[]', space=smem, size = 0x4, offset = 0x4, fixed_abs, tag = 'smem constant byte address 0x4 - core index']
  #allocation1 [shape = 'u32[144,128]{1,0:T(1,128)}', space=vmem, size = 0x12000, scoped, tag = 'internal scratch']
  %s0 = inlined_call_operand.vmem [shape: f32[16,32], index: 0, kind: input, shape index: {}]
  %s1 = inlined_call_operand.vmem [shape: s32[2,1,8], index: 1, kind: input, shape index: {}]
  %s2 = inlined_call_operand.vmem [shape: f32[32,64], index: 2, kind: input, shape index: {}]
  %s3 = inlined_call_operand.vmem [shape: f32[1,64], index: 3, kind: input, shape index: {}]
  %s4 = inlined_call_operand.vmem [shape: f32[64,32], index: 4, kind: input, shape index: {}]
  %s5 = inlined_call_operand.vmem [shape: f32[1,32], index: 5, kind: input, shape index: {}]
  %s6 = inlined_call_operand.vmem [shape: f32[1,32], index: 6, kind: input, shape index: {}]
  %s7 = inlined_call_operand.vmem [shape: f32[1,32], index: 7, kind: input, shape index: {}]
  %s8 = inlined_call_operand.vmem [shape: f32[32,8], index: 8, kind: input, shape index: {}]
  %s9 = inlined_call_operand.vmem [shape: f32[1,8], index: 9, kind: input, shape index: {}]
  %s10 = inlined_call_operand.vmem [shape: f32[16,8], index: 10, kind: output, shape index: {0}]
  %s11 = inlined_call_operand.vmem [shape: f32[2,8,8], index: 11, kind: output, shape index: {1}]
  %12 = xla_tuple %s10, %s11
  %s13 = sld [smem:[#allocation0]]
  $region81: #{enhanced_attention_forward.2} parent=0
    _
  %s15 = ssub.s32 1, %s13
  %s16 = scalar_select 0, %s15, %s13
  loop: start=0, step=1, limit=4
  $region2: #{enhanced_attention_forward.2} parent=0 // loop_pre_header
    _
  $region3: #{enhanced_attention_forward.2} parent=0 // loop_header
    %s18 = sphi 0, %s22
    %p19 = scmp.ge.s32.totalorder %s18, 4
    %s28 = sphi 0, %s30
    %s31 = sphi 0, %s28
    %s32 = sphi 0, %s31
    %s48 = sphi 0, %s32
    %s54 = sphi 0, %s56
    %s57 = sphi 0, %s54
    %s58 = sphi 0, %s57
    %s74 = sphi 0, %s58
    %s78 = sphi 0, %s78
    %s80 = sphi 0, %s78
    %s81 = sphi 0, %s80
    %s95 = sphi 0, %s81
    %s99 = sphi 0, %s99
    %s101 = sphi 0, %s99
    %s102 = sphi 0, %s101
    %s116 = sphi 0, %s102
    %s120 = sphi 0, %s120
    %s122 = sphi 0, %s120
    %s123 = sphi 0, %s122
    %s137 = sphi 0, %s123
    %s141 = sphi 0, %s141
    %s143 = sphi 0, %s141
    %s144 = sphi 0, %s143
    %s158 = sphi 0, %s144
    %s162 = sphi 0, %s162
    %s164 = sphi 0, %s162
    %s165 = sphi 0, %s164
    %s179 = sphi 0, %s165
    %s183 = sphi 0, %s183
    %s185 = sphi 0, %s183
    %s186 = sphi 0, %s185
    %s200 = sphi 0, %s186
    %s204 = sphi 0, %s204
    %s206 = sphi 0, %s204
    %s207 = sphi 0, %s206
    %s221 = sphi 0, %s207
    %s225 = sphi 0, %s225
    %s227 = sphi 0, %s225
    %s228 = sphi 0, %s227
    %s242 = sphi 0, %s228
    %s248 = sphi 0, %s250
    %s251 = sphi 0, %s248
    %s252 = sphi 0, %s251
    %s268 = sphi 0, %s252
    %s274 = sphi 0, %s276
    %s277 = sphi 0, %s274
    %s278 = sphi 0, %s277
    %s294 = sphi 0, %s278
  $region4: #{enhanced_attention_forward.2} parent=0 // loop_header_branch
    %21 = sbr.rel (%p19) target = $region8
  $region5: #{enhanced_attention_forward.2} parent=0 // loop_body
    %s23 = ssub.s32 %s18, 1
    %s24 = ssub.s32 %s18, 2
    %s25 = sadd.s32 %s18, 1
    %s26 = ssub.s32 %s18, %s25
    %p27 = scmp.eq.s32.totalorder %s26, 0
    %s29 = sadd.s32 %s28, 1
    %s30 = scalar_select %p27, %s28, %s29
    %p33 = pneg %p27
    %p34 = scmp.eq.s32.totalorder %s18, 1
    %p35 = por %p33, %p34
    %p36 = scmp.ne.s32.totalorder %s28, %s31
    %p37 = scmp.eq.s32.totalorder %s18, 0
    %p38 = por %p36, %p37
    %p39 = scmp.ne.s32.totalorder %s28, %s31
    %p40 = scmp.eq.s32.totalorder %s23, 1
    %p41 = por %p39, %p40
    %p42 = scmp.ne.s32.totalorder %s31, %s32
    %p43 = scmp.eq.s32.totalorder %s23, 0
    %p44 = por %p42, %p43
    %p45 = scmp.ne.s32.totalorder %s31, %s32
    %p46 = scmp.eq.s32.totalorder %s24, 1
    %p47 = por %p45, %p46
    %p49 = scmp.ne.s32.totalorder %s32, %s48
    %p50 = scmp.eq.s32.totalorder %s24, 0
    %p51 = por %p49, %p50
    %s52 = ssub.s32 %s18, %s25
    %p53 = scmp.eq.s32.totalorder %s52, 0
    %s55 = sadd.s32 %s54, 1
    %s56 = scalar_select %p53, %s54, %s55
    %p59 = pneg %p53
    %p60 = scmp.eq.s32.totalorder %s18, 1
    %p61 = por %p59, %p60
    %p62 = scmp.ne.s32.totalorder %s54, %s57
    %p63 = scmp.eq.s32.totalorder %s18, 0
    %p64 = por %p62, %p63
    %p65 = scmp.ne.s32.totalorder %s54, %s57
    %p66 = scmp.eq.s32.totalorder %s23, 1
    %p67 = por %p65, %p66
    %p68 = scmp.ne.s32.totalorder %s57, %s58
    %p69 = scmp.eq.s32.totalorder %s23, 0
    %p70 = por %p68, %p69
    %p71 = scmp.ne.s32.totalorder %s57, %s58
    %p72 = scmp.eq.s32.totalorder %s24, 1
    %p73 = por %p71, %p72
    %p75 = scmp.ne.s32.totalorder %s58, %s74
    %p76 = scmp.eq.s32.totalorder %s24, 0
    %p77 = por %p75, %p76
    %s79 = sadd.s32 %s78, 1
    %p82 = scmp.eq.s32.totalorder %s18, 1
    %p83 = scmp.ne.s32.totalorder %s78, %s80
    %p84 = scmp.eq.s32.totalorder %s18, 0
    %p85 = por %p83, %p84
    %p86 = scmp.ne.s32.totalorder %s78, %s80
    %p87 = scmp.eq.s32.totalorder %s23, 1
    %p88 = por %p86, %p87
    %p89 = scmp.ne.s32.totalorder %s80, %s81
    %p90 = scmp.eq.s32.totalorder %s23, 0
    %p91 = por %p89, %p90
    %p92 = scmp.ne.s32.totalorder %s80, %s81
    %p93 = scmp.eq.s32.totalorder %s24, 1
    %p94 = por %p92, %p93
    %p96 = scmp.ne.s32.totalorder %s81, %s95
    %p97 = scmp.eq.s32.totalorder %s24, 0
    %p98 = por %p96, %p97
    %s100 = sadd.s32 %s99, 1
    %p103 = scmp.eq.s32.totalorder %s18, 1
    %p104 = scmp.ne.s32.totalorder %s99, %s101
    %p105 = scmp.eq.s32.totalorder %s18, 0
    %p106 = por %p104, %p105
    %p107 = scmp.ne.s32.totalorder %s99, %s101
    %p108 = scmp.eq.s32.totalorder %s23, 1
    %p109 = por %p107, %p108
    %p110 = scmp.ne.s32.totalorder %s101, %s102
    %p111 = scmp.eq.s32.totalorder %s23, 0
    %p112 = por %p110, %p111
    %p113 = scmp.ne.s32.totalorder %s101, %s102
    %p114 = scmp.eq.s32.totalorder %s24, 1
    %p115 = por %p113, %p114
    %p117 = scmp.ne.s32.totalorder %s102, %s116
    %p118 = scmp.eq.s32.totalorder %s24, 0
    %p119 = por %p117, %p118
    %s121 = sadd.s32 %s120, 1
    %p124 = scmp.eq.s32.totalorder %s18, 1
    %p125 = scmp.ne.s32.totalorder %s120, %s122
    %p126 = scmp.eq.s32.totalorder %s18, 0
    %p127 = por %p125, %p126
    %p128 = scmp.ne.s32.totalorder %s120, %s122
    %p129 = scmp.eq.s32.totalorder %s23, 1
    %p130 = por %p128, %p129
    %p131 = scmp.ne.s32.totalorder %s122, %s123
    %p132 = scmp.eq.s32.totalorder %s23, 0
    %p133 = por %p131, %p132
    %p134 = scmp.ne.s32.totalorder %s122, %s123
    %p135 = scmp.eq.s32.totalorder %s24, 1
    %p136 = por %p134, %p135
    %p138 = scmp.ne.s32.totalorder %s123, %s137
    %p139 = scmp.eq.s32.totalorder %s24, 0
    %p140 = por %p138, %p139
    %s142 = sadd.s32 %s141, 1
    %p145 = scmp.eq.s32.totalorder %s18, 1
    %p146 = scmp.ne.s32.totalorder %s141, %s143
    %p147 = scmp.eq.s32.totalorder %s18, 0
    %p148 = por %p146, %p147
    %p149 = scmp.ne.s32.totalorder %s141, %s143
    %p150 = scmp.eq.s32.totalorder %s23, 1
    %p151 = por %p149, %p150
    %p152 = scmp.ne.s32.totalorder %s143, %s144
    %p153 = scmp.eq.s32.totalorder %s23, 0
    %p154 = por %p152, %p153
    %p155 = scmp.ne.s32.totalorder %s143, %s144
    %p156 = scmp.eq.s32.totalorder %s24, 1
    %p157 = por %p155, %p156
    %p159 = scmp.ne.s32.totalorder %s144, %s158
    %p160 = scmp.eq.s32.totalorder %s24, 0
    %p161 = por %p159, %p160
    %s163 = sadd.s32 %s162, 1
    %p166 = scmp.eq.s32.totalorder %s18, 1
    %p167 = scmp.ne.s32.totalorder %s162, %s164
    %p168 = scmp.eq.s32.totalorder %s18, 0
    %p169 = por %p167, %p168
    %p170 = scmp.ne.s32.totalorder %s162, %s164
    %p171 = scmp.eq.s32.totalorder %s23, 1
    %p172 = por %p170, %p171
    %p173 = scmp.ne.s32.totalorder %s164, %s165
    %p174 = scmp.eq.s32.totalorder %s23, 0
    %p175 = por %p173, %p174
    %p176 = scmp.ne.s32.totalorder %s164, %s165
    %p177 = scmp.eq.s32.totalorder %s24, 1
    %p178 = por %p176, %p177
    %p180 = scmp.ne.s32.totalorder %s165, %s179
    %p181 = scmp.eq.s32.totalorder %s24, 0
    %p182 = por %p180, %p181
    %s184 = sadd.s32 %s183, 1
    %p187 = scmp.eq.s32.totalorder %s18, 1
    %p188 = scmp.ne.s32.totalorder %s183, %s185
    %p189 = scmp.eq.s32.totalorder %s18, 0
    %p190 = por %p188, %p189
    %p191 = scmp.ne.s32.totalorder %s183, %s185
    %p192 = scmp.eq.s32.totalorder %s23, 1
    %p193 = por %p191, %p192
    %p194 = scmp.ne.s32.totalorder %s185, %s186
    %p195 = scmp.eq.s32.totalorder %s23, 0
    %p196 = por %p194, %p195
    %p197 = scmp.ne.s32.totalorder %s185, %s186
    %p198 = scmp.eq.s32.totalorder %s24, 1
    %p199 = por %p197, %p198
    %p201 = scmp.ne.s32.totalorder %s186, %s200
    %p202 = scmp.eq.s32.totalorder %s24, 0
    %p203 = por %p201, %p202
    %s205 = sadd.s32 %s204, 1
    %p208 = scmp.eq.s32.totalorder %s18, 1
    %p209 = scmp.ne.s32.totalorder %s204, %s206
    %p210 = scmp.eq.s32.totalorder %s18, 0
    %p211 = por %p209, %p210
    %p212 = scmp.ne.s32.totalorder %s204, %s206
    %p213 = scmp.eq.s32.totalorder %s23, 1
    %p214 = por %p212, %p213
    %p215 = scmp.ne.s32.totalorder %s206, %s207
    %p216 = scmp.eq.s32.totalorder %s23, 0
    %p217 = por %p215, %p216
    %p218 = scmp.ne.s32.totalorder %s206, %s207
    %p219 = scmp.eq.s32.totalorder %s24, 1
    %p220 = por %p218, %p219
    %p222 = scmp.ne.s32.totalorder %s207, %s221
    %p223 = scmp.eq.s32.totalorder %s24, 0
    %p224 = por %p222, %p223
    %s226 = sadd.s32 %s225, 1
    %p229 = scmp.eq.s32.totalorder %s18, 1
    %p230 = scmp.ne.s32.totalorder %s225, %s227
    %p231 = scmp.eq.s32.totalorder %s18, 0
    %p232 = por %p230, %p231
    %p233 = scmp.ne.s32.totalorder %s225, %s227
    %p234 = scmp.eq.s32.totalorder %s23, 1
    %p235 = por %p233, %p234
    %p236 = scmp.ne.s32.totalorder %s227, %s228
    %p237 = scmp.eq.s32.totalorder %s23, 0
    %p238 = por %p236, %p237
    %p239 = scmp.ne.s32.totalorder %s227, %s228
    %p240 = scmp.eq.s32.totalorder %s24, 1
    %p241 = por %p239, %p240
    %p243 = scmp.ne.s32.totalorder %s228, %s242
    %p244 = scmp.eq.s32.totalorder %s24, 0
    %p245 = por %p243, %p244
    %s246 = ssub.s32 %s18, %s25
    %p247 = scmp.eq.s32.totalorder %s246, 0
    %s249 = sadd.s32 %s248, 1
    %s250 = scalar_select %p247, %s248, %s249
    %p253 = pneg %p247
    %p254 = scmp.eq.s32.totalorder %s18, 1
    %p255 = por %p253, %p254
    %p256 = scmp.ne.s32.totalorder %s248, %s251
    %p257 = scmp.eq.s32.totalorder %s18, 0
    %p258 = por %p256, %p257
    %p259 = scmp.ne.s32.totalorder %s248, %s251
    %p260 = scmp.eq.s32.totalorder %s23, 1
    %p261 = por %p259, %p260
    %p262 = scmp.ne.s32.totalorder %s251, %s252
    %p263 = scmp.eq.s32.totalorder %s23, 0
    %p264 = por %p262, %p263
    %p265 = scmp.ne.s32.totalorder %s251, %s252
    %p266 = scmp.eq.s32.totalorder %s24, 1
    %p267 = por %p265, %p266
    %p269 = scmp.ne.s32.totalorder %s252, %s268
    %p270 = scmp.eq.s32.totalorder %s24, 0
    %p271 = por %p269, %p270
    %s272 = ssub.s32 %s18, %s25
    %p273 = scmp.eq.s32.totalorder %s272, 0
    %s275 = sadd.s32 %s274, 1
    %s276 = scalar_select %p273, %s274, %s275
    %p279 = pneg %p273
    %p280 = scmp.eq.s32.totalorder %s18, 1
    %p281 = por %p279, %p280
    %p282 = scmp.ne.s32.totalorder %s274, %s277
    %p283 = scmp.eq.s32.totalorder %s18, 0
    %p284 = por %p282, %p283
    %p285 = scmp.ne.s32.totalorder %s274, %s277
    %p286 = scmp.eq.s32.totalorder %s23, 1
    %p287 = por %p285, %p286
    %p288 = scmp.ne.s32.totalorder %s277, %s278
    %p289 = scmp.eq.s32.totalorder %s23, 0
    %p290 = por %p288, %p289
    %p291 = scmp.ne.s32.totalorder %s277, %s278
    %p292 = scmp.eq.s32.totalorder %s24, 1
    %p293 = por %p291, %p292
    %p295 = scmp.ne.s32.totalorder %s278, %s294
    %p296 = scmp.eq.s32.totalorder %s24, 0
    %p297 = por %p295, %p296
    %p298 = scmp.le.s32.totalorder 1, %s18
    %p299 = scmp.lt.s32.totalorder %s18, 3
    %p300 = pnand %p298, %p299
    %p301 = pneg %p300
    // Predicated region
    $region9: #{enhanced_attention_forward.2} parent=5 // pred_check
      _
    $region10: #{enhanced_attention_forward.2} parent=5 // pred_check_branch
      %303 = sbr.rel (%p300) target = $region12
    $region11: #{enhanced_attention_forward.2} parent=5 // pred_region
      %s304 = ssub.s32 %s18, 1
      // Predicated region
      $region13: #{enhanced_attention_forward.2} parent=11 // pred_check
        %p305 = pneg %p91
      $region14: #{enhanced_attention_forward.2} parent=11 // pred_check_branch
        %307 = sbr.rel (%p305) target = $region16
      $region15: #{enhanced_attention_forward.2} parent=11 // pred_region
        _
      $region16: #{enhanced_attention_forward.2} parent=11 // pred_fallthru
        _
      // Predicated region
      $region17: #{enhanced_attention_forward.2} parent=11 // pred_check
        %p308 = pneg %p112
      $region18: #{enhanced_attention_forward.2} parent=11 // pred_check_branch
        %310 = sbr.rel (%p308) target = $region20
      $region19: #{enhanced_attention_forward.2} parent=11 // pred_region
        _
      $region20: #{enhanced_attention_forward.2} parent=11 // pred_fallthru
        _
      // Predicated region
      $region21: #{enhanced_attention_forward.2} parent=11 // pred_check
        %p311 = pneg %p133
      $region22: #{enhanced_attention_forward.2} parent=11 // pred_check_branch
        %313 = sbr.rel (%p311) target = $region24
      $region23: #{enhanced_attention_forward.2} parent=11 // pred_region
        _
      $region24: #{enhanced_attention_forward.2} parent=11 // pred_fallthru
        _
      // Predicated region
      $region25: #{enhanced_attention_forward.2} parent=11 // pred_check
        %p314 = pneg %p154
      $region26: #{enhanced_attention_forward.2} parent=11 // pred_check_branch
        %316 = sbr.rel (%p314) target = $region28
      $region27: #{enhanced_attention_forward.2} parent=11 // pred_region
        _
      $region28: #{enhanced_attention_forward.2} parent=11 // pred_fallthru
        _
      // Predicated region
      $region29: #{enhanced_attention_forward.2} parent=11 // pred_check
        %p317 = pneg %p175
      $region30: #{enhanced_attention_forward.2} parent=11 // pred_check_branch
        %319 = sbr.rel (%p317) target = $region32
      $region31: #{enhanced_attention_forward.2} parent=11 // pred_region
        _
      $region32: #{enhanced_attention_forward.2} parent=11 // pred_fallthru
        _
      // Predicated region
      $region33: #{enhanced_attention_forward.2} parent=11 // pred_check
        %p320 = pneg %p196
      $region34: #{enhanced_attention_forward.2} parent=11 // pred_check_branch
        %322 = sbr.rel (%p320) target = $region36
      $region35: #{enhanced_attention_forward.2} parent=11 // pred_region
        _
      $region36: #{enhanced_attention_forward.2} parent=11 // pred_fallthru
        _
      // Predicated region
      $region37: #{enhanced_attention_forward.2} parent=11 // pred_check
        %p323 = pneg %p217
      $region38: #{enhanced_attention_forward.2} parent=11 // pred_check_branch
        %325 = sbr.rel (%p323) target = $region40
      $region39: #{enhanced_attention_forward.2} parent=11 // pred_region
        _
      $region40: #{enhanced_attention_forward.2} parent=11 // pred_fallthru
        _
      // Predicated region
      $region41: #{enhanced_attention_forward.2} parent=11 // pred_check
        %p326 = pneg %p238
      $region42: #{enhanced_attention_forward.2} parent=11 // pred_check_branch
        %328 = sbr.rel (%p326) target = $region44
      $region43: #{enhanced_attention_forward.2} parent=11 // pred_region
        _
      $region44: #{enhanced_attention_forward.2} parent=11 // pred_fallthru
        _
    $region12: #{enhanced_attention_forward.2} parent=5 // pred_fallthru
      _
    %p329 = scmp.lt.s32.totalorder %s18, 2
    // Predicated region
    $region45: #{enhanced_attention_forward.2} parent=5 // pred_check
      %p330 = pneg %p329
    $region46: #{enhanced_attention_forward.2} parent=5 // pred_check_branch
      %332 = sbr.rel (%p330) target = $region48
    $region47: #{enhanced_attention_forward.2} parent=5 // pred_region
      // Predicated region
      $region49: #{enhanced_attention_forward.2} parent=47 // pred_check
        %p333 = pneg %p38
      $region50: #{enhanced_attention_forward.2} parent=47 // pred_check_branch
        %335 = sbr.rel (%p333) target = $region52
      $region51: #{enhanced_attention_forward.2} parent=47 // pred_region
        %p336 = scmp.lt.s32.totalorder %s18, 1
        %s337 = scalar_select %p336, %s18, 1
        %s338 = smul.addr %s337, 8
        %s339 = scalar_lea.vmem %s0, %s338
      $region52: #{enhanced_attention_forward.2} parent=47 // pred_fallthru
        _
      // Predicated region
      $region53: #{enhanced_attention_forward.2} parent=47 // pred_check
        %p340 = pneg %p64
      $region54: #{enhanced_attention_forward.2} parent=47 // pred_check_branch
        %342 = sbr.rel (%p340) target = $region56
      $region55: #{enhanced_attention_forward.2} parent=47 // pred_region
        %p343 = scmp.lt.s32.totalorder %s18, 1
        %s344 = scalar_select %p343, %s18, 1
        %s345 = scalar_lea.vmem %s1, %s344
      $region56: #{enhanced_attention_forward.2} parent=47 // pred_fallthru
        _
    $region48: #{enhanced_attention_forward.2} parent=5 // pred_fallthru
      _
    %p346 = scmp.le.s32.totalorder 1, %s18
    %p347 = scmp.lt.s32.totalorder %s18, 3
    %p348 = pnand %p346, %p347
    %p349 = pneg %p348
    // Predicated region
    $region57: #{enhanced_attention_forward.2} parent=5 // pred_check
      _
    $region58: #{enhanced_attention_forward.2} parent=5 // pred_check_branch
      %351 = sbr.rel (%p348) target = $region60
    $region59: #{enhanced_attention_forward.2} parent=5 // pred_region
      %s352 = ssub.s32 %s18, 1
      %p353 = scmp.lt.s32.totalorder %s23, 1
      %s354 = scalar_select %p353, %s23, 1
      %s355 = smul.addr %s354, 8
      %s356 = scalar_lea.vmem %s0, %s355
      %p357 = pneg %p44
      %p358 = pneg %p41
      %p359 = scmp.lt.s32.totalorder %s23, 1
      %s360 = scalar_select %p359, %s23, 1
      %s361 = scalar_lea.vmem %s1, %s360
      %p362 = pneg %p70
      %p363 = pneg %p67
      %p364 = pneg %p91
      %p365 = pneg %p88
      %p366 = pneg %p112
      %p367 = pneg %p109
      %p368 = pneg %p133
      %p369 = pneg %p130
      %p370 = pneg %p154
      %p371 = pneg %p151
      %p372 = pneg %p175
      %p373 = pneg %p172
      %p374 = pneg %p196
      %p375 = pneg %p193
      %p376 = pneg %p217
      %p377 = pneg %p214
      %p378 = pneg %p238
      %p379 = pneg %p235
      %p380 = pneg %p264
      %p381 = pneg %p261
      %p382 = scmp.lt.s32.totalorder %s23, 1
      %s383 = scalar_select %p382, %s23, 1
      %s384 = smul.addr %s383, 8
      %s385 = scalar_lea.vmem %s10, %s384
      %p386 = pneg %p290
      %p387 = pneg %p287
      %p388 = scmp.lt.s32.totalorder %s23, 1
      %s389 = scalar_select %p388, %s23, 1
      %s390 = smul.addr %s389, 8
      %s391 = scalar_lea.vmem %s11, %s390
      %p392 = scmp.lt.s32.totalorder %s23, 1
      %s393 = scalar_select %p392, %s23, 1
      %s394 = smul.addr %s393, 8
      %s395 = scalar_lea.vmem %s0, %s394
      %p396 = scmp.lt.s32.totalorder %s23, 1
      %s397 = scalar_select %p396, %s23, 1
      %s398 = scalar_lea.vmem %s1, %s397
      %p399 = scmp.lt.s32.totalorder %s23, 1
      %s400 = scalar_select %p399, %s23, 1
      %s401 = smul.addr %s400, 8
      %s402 = scalar_lea.vmem %s10, %s401
      %p403 = scmp.lt.s32.totalorder %s23, 1
      %s404 = scalar_select %p403, %s23, 1
      %s405 = smul.addr %s404, 8
      %s406 = scalar_lea.vmem %s11, %s405
      %v407 = vld [vmem:[%s395] sm:$0xff]
      %v408 = vld [vmem:[%s2] sm:$0xff]
      %v409 = vld [vmem:[%s2 + $0x8] sm:$0xff]
      %v410 = vld [vmem:[%s2 + $0x10] sm:$0xff]
      %v411 = vld [vmem:[%s2 + $0x18] sm:$0xff]
      %v412 = vld [vmem:[%s3] sm:$0x1]
      %v414 = vlaneseq
      %v415 = vshrl.u32 %v414, 7
      %v416 = vsub.s32 0, %v415
      %v417 = vrot.slane %v412, %v416
      %vm419 = vcmask 261120
      %v421 = vsel %vm419, %v407, 0
      %423 = vmatprep.subr.mxu0 0.0
      %424 = vmatpush1.msra.mxu0 %v408
      %425 = vmatprep.subr.mxu0 0.0
      %426 = vmatpush1.msra.mxu0 %v409
      %427 = vmatprep.subr.mxu0 0.0
      %428 = vmatpush1.msra.mxu0 %v410
      %429 = vmatprep.subr.mxu0 0.0
      %430 = vmatpush1.msra.mxu0 %v411
      %431 = vmatprep.subr.mxu0 0.0
      %432 = vmatpush1.msra.mxu0 0.0
      %433 = vmatprep.subr.mxu0 0.0
      %434 = vmatpush1.msra.mxu0 0.0
      %435 = vmatprep.subr.mxu0 0.0
      %436 = vmatpush1.msra.mxu0 0.0
      %437 = vmatprep.subr.mxu0 0.0
      %438 = vmatpush1.msra.mxu0 0.0
      %439 = vmatprep.subr.mxu0 0.0
      %440 = vmatpush1.msra.mxu0 0.0
      %441 = vmatprep.subr.mxu0 0.0
      %442 = vmatpush1.msra.mxu0 0.0
      %443 = vmatprep.subr.mxu0 0.0
      %444 = vmatpush1.msra.mxu0 0.0
      %445 = vmatprep.subr.mxu0 0.0
      %446 = vmatpush1.msra.mxu0 0.0
      %447 = vmatprep.subr.mxu0 0.0
      %448 = vmatpush1.msra.mxu0 0.0
      %449 = vmatprep.subr.mxu0 0.0
      %450 = vmatpush1.msra.mxu0 0.0
      %451 = vmatprep.subr.mxu0 0.0
      %452 = vmatpush1.msra.mxu0 0.0
      %453 = vmatprep.subr.mxu0 0.0
      %454 = vmatpush1.msra.mxu0 0.0
      %455 = vmatprep.subr.mxu0 0.0
      %456 = vmatpush1.msra.mxu0 0.0
      %457 = vmatprep.subr.mxu0 0.0
      %458 = vmatpush1.msra.mxu0 0.0
      %459 = vmatprep.subr.mxu0 0.0
      %460 = vmatpush1.msra.mxu0 0.0
      %461 = vmatprep.subr.mxu0 0.0
      %462 = vmatpush1.msra.mxu0 0.0
      %463 = vmatprep.subr.mxu0 0.0
      %464 = vmatpush1.msra.mxu0 0.0
      %465 = vmatprep.subr.mxu0 0.0
      %466 = vmatpush1.msra.mxu0 0.0
      %467 = vmatprep.subr.mxu0 0.0
      %468 = vmatpush1.msra.mxu0 0.0
      %469 = vmatprep.subr.mxu0 0.0
      %470 = vmatpush1.msra.mxu0 0.0
      %471 = vmatprep.subr.mxu0 0.0
      %472 = vmatpush1.msra.mxu0 0.0
      %473 = vmatprep.subr.mxu0 0.0
      %474 = vmatpush1.msra.mxu0 0.0
      %475 = vmatprep.subr.mxu0 0.0
      %476 = vmatpush1.msra.mxu0 0.0
      %477 = vmatprep.subr.mxu0 0.0
      %478 = vmatpush1.msra.mxu0 0.0
      %479 = vmatprep.subr.mxu0 0.0
      %480 = vmatpush1.msra.mxu0 0.0
      %481 = vmatprep.subr.mxu0 0.0
      %482 = vmatpush1.msra.mxu0 0.0
      %483 = vmatprep.subr.mxu0 0.0
      %484 = vmatpush1.msra.mxu0 0.0
      %485 = vmatprep.subr.mxu0 0.0
      %486 = vmatpush1.msra.mxu0 0.0
      %487 = vmatprep.mubr.f32.mxu0 0.0
      %488 = vmatmul.mubr.f32.gmra.mrb[0].mxu0 %v421
      %v489 = vpop.f32.mrb[0].mxu0
      %v490 = vadd.f32 %v417, %v489
      %v491 = vpop.f32.mrb[0].mxu0
      %492 = vdwg.mxu0
      %v493 = vmax.f32 %v490, 0.0
      %v494 = vld [vmem:[%s4] sm:$0xff]
      %v495 = vld [vmem:[%s4 + $0x8] sm:$0xff]
      %v496 = vld [vmem:[%s4 + $0x10] sm:$0xff]
      %v497 = vld [vmem:[%s4 + $0x18] sm:$0xff]
      %v498 = vld [vmem:[%s4 + $0x20] sm:$0xff]
      %v499 = vld [vmem:[%s4 + $0x28] sm:$0xff]
      %v500 = vld [vmem:[%s4 + $0x30] sm:$0xff]
      %v501 = vld [vmem:[%s4 + $0x38] sm:$0xff]
      %v502 = vld [vmem:[%s5] sm:$0x1]
      %v504 = vlaneseq
      %v505 = vshrl.u32 %v504, 7
      %v506 = vsub.s32 0, %v505
      %v507 = vrot.slane %v502, %v506
      %vm509 = vcmask 523264
      %v511 = vsel %vm509, %v493, 0
      %513 = vmatprep.subr.mxu0 0.0
      %514 = vmatpush1.msra.mxu0 %v494
      %515 = vmatprep.subr.mxu0 0.0
      %516 = vmatpush1.msra.mxu0 %v495
      %517 = vmatprep.subr.mxu0 0.0
      %518 = vmatpush1.msra.mxu0 %v496
      %519 = vmatprep.subr.mxu0 0.0
      %520 = vmatpush1.msra.mxu0 %v497
      %521 = vmatprep.subr.mxu0 0.0
      %522 = vmatpush1.msra.mxu0 %v498
      %523 = vmatprep.subr.mxu0 0.0
      %524 = vmatpush1.msra.mxu0 %v499
      %525 = vmatprep.subr.mxu0 0.0
      %526 = vmatpush1.msra.mxu0 %v500
      %527 = vmatprep.subr.mxu0 0.0
      %528 = vmatpush1.msra.mxu0 %v501
      %529 = vmatprep.subr.mxu0 0.0
      %530 = vmatpush1.msra.mxu0 0.0
      %531 = vmatprep.subr.mxu0 0.0
      %532 = vmatpush1.msra.mxu0 0.0
      %533 = vmatprep.subr.mxu0 0.0
      %534 = vmatpush1.msra.mxu0 0.0
      %535 = vmatprep.subr.mxu0 0.0
      %536 = vmatpush1.msra.mxu0 0.0
      %537 = vmatprep.subr.mxu0 0.0
      %538 = vmatpush1.msra.mxu0 0.0
      %539 = vmatprep.subr.mxu0 0.0
      %540 = vmatpush1.msra.mxu0 0.0
      %541 = vmatprep.subr.mxu0 0.0
      %542 = vmatpush1.msra.mxu0 0.0
      %543 = vmatprep.subr.mxu0 0.0
      %544 = vmatpush1.msra.mxu0 0.0
      %545 = vmatprep.subr.mxu0 0.0
      %546 = vmatpush1.msra.mxu0 0.0
      %547 = vmatprep.subr.mxu0 0.0
      %548 = vmatpush1.msra.mxu0 0.0
      %549 = vmatprep.subr.mxu0 0.0
      %550 = vmatpush1.msra.mxu0 0.0
      %551 = vmatprep.subr.mxu0 0.0
      %552 = vmatpush1.msra.mxu0 0.0
      %553 = vmatprep.subr.mxu0 0.0
      %554 = vmatpush1.msra.mxu0 0.0
      %555 = vmatprep.subr.mxu0 0.0
      %556 = vmatpush1.msra.mxu0 0.0
      %557 = vmatprep.subr.mxu0 0.0
      %558 = vmatpush1.msra.mxu0 0.0
      %559 = vmatprep.subr.mxu0 0.0
      %560 = vmatpush1.msra.mxu0 0.0
      %561 = vmatprep.subr.mxu0 0.0
      %562 = vmatpush1.msra.mxu0 0.0
      %563 = vmatprep.subr.mxu0 0.0
      %564 = vmatpush1.msra.mxu0 0.0
      %565 = vmatprep.subr.mxu0 0.0
      %566 = vmatpush1.msra.mxu0 0.0
      %567 = vmatprep.subr.mxu0 0.0
      %568 = vmatpush1.msra.mxu0 0.0
      %569 = vmatprep.subr.mxu0 0.0
      %570 = vmatpush1.msra.mxu0 0.0
      %571 = vmatprep.subr.mxu0 0.0
      %572 = vmatpush1.msra.mxu0 0.0
      %573 = vmatprep.subr.mxu0 0.0
      %574 = vmatpush1.msra.mxu0 0.0
      %575 = vmatprep.subr.mxu0 0.0
      %576 = vmatpush1.msra.mxu0 0.0
      %577 = vmatprep.mubr.f32.mxu0 0.0
      %578 = vmatmul.mubr.f32.gmra.mrb[0].mxu0 %v511
      %v579 = vpop.f32.mrb[0].mxu0
      %v580 = vadd.f32 %v507, %v579
      %v581 = vpop.f32.mrb[0].mxu0
      %582 = vdwg.mxu0
      %v583 = vmax.f32 %v580, 0.0
      %v584 = vsel %vm419, %v583, 0.0
      %585 = vadd.xlane.f32.xlu0 %v584
      %v586 = vpop.xlane.xlu0 %585
      %v587 = vrcp.pop 32.0
      %v588 = vmul.f32 %v586, %v587
      %v589 = vmul.f32 %v583, %v583
      %v590 = vsel %vm419, %v589, 0.0
      %591 = vadd.xlane.f32.xlu0 %v590
      %v592 = vpop.xlane.xlu0 %591
      %v593 = vmul.f32 %v592, %v587
      %v594 = vmul.f32 %v588, %v588
      %v595 = vsub.f32 %v593, %v594
      %v596 = vsub.f32 %v583, %v588
      %v597 = vadd.f32 %v595, 1e-05
      %v598 = vrsqrt.pop %v597
      %v599 = vmul.f32 %v596, %v598
      %v600 = vld [vmem:[%s6] sm:$0x1]
      %v602 = vlaneseq
      %v603 = vshrl.u32 %v602, 7
      %v604 = vsub.s32 0, %v603
      %v605 = vrot.slane %v600, %v604
      %v607 = vmul.f32 %v599, %v605
      %v608 = vld [vmem:[%s7] sm:$0x1]
      %v610 = vlaneseq
      %v611 = vshrl.u32 %v610, 7
      %v612 = vsub.s32 0, %v611
      %v613 = vrot.slane %v608, %v612
      %v615 = vadd.f32 %v607, %v613
      %v616 = vld [vmem:[%s8] sm:$0xff]
      %v617 = vld [vmem:[%s8 + $0x8] sm:$0xff]
      %v618 = vld [vmem:[%s8 + $0x10] sm:$0xff]
      %v619 = vld [vmem:[%s8 + $0x18] sm:$0xff]
      %v620 = vld [vmem:[%s9] sm:$0x1]
      %v622 = vlaneseq
      %v623 = vshrl.u32 %v622, 7
      %v624 = vsub.s32 0, %v623
      %v625 = vrot.slane %v620, %v624
      %v628 = vsel %vm419, %v615, 0
      %630 = vmatprep.subr.mxu0 0.0
      %631 = vmatpush1.msra.mxu0 %v616
      %632 = vmatprep.subr.mxu0 0.0
      %633 = vmatpush1.msra.mxu0 %v617
      %634 = vmatprep.subr.mxu0 0.0
      %635 = vmatpush1.msra.mxu0 %v618
      %636 = vmatprep.subr.mxu0 0.0
      %637 = vmatpush1.msra.mxu0 %v619
      %638 = vmatprep.subr.mxu0 0.0
      %639 = vmatpush1.msra.mxu0 0.0
      %640 = vmatprep.subr.mxu0 0.0
      %641 = vmatpush1.msra.mxu0 0.0
      %642 = vmatprep.subr.mxu0 0.0
      %643 = vmatpush1.msra.mxu0 0.0
      %644 = vmatprep.subr.mxu0 0.0
      %645 = vmatpush1.msra.mxu0 0.0
      %646 = vmatprep.subr.mxu0 0.0
      %647 = vmatpush1.msra.mxu0 0.0
      %648 = vmatprep.subr.mxu0 0.0
      %649 = vmatpush1.msra.mxu0 0.0
      %650 = vmatprep.subr.mxu0 0.0
      %651 = vmatpush1.msra.mxu0 0.0
      %652 = vmatprep.subr.mxu0 0.0
      %653 = vmatpush1.msra.mxu0 0.0
      %654 = vmatprep.subr.mxu0 0.0
      %655 = vmatpush1.msra.mxu0 0.0
      %656 = vmatprep.subr.mxu0 0.0
      %657 = vmatpush1.msra.mxu0 0.0
      %658 = vmatprep.subr.mxu0 0.0
      %659 = vmatpush1.msra.mxu0 0.0
      %660 = vmatprep.subr.mxu0 0.0
      %661 = vmatpush1.msra.mxu0 0.0
      %662 = vmatprep.subr.mxu0 0.0
      %663 = vmatpush1.msra.mxu0 0.0
      %664 = vmatprep.subr.mxu0 0.0
      %665 = vmatpush1.msra.mxu0 0.0
      %666 = vmatprep.subr.mxu0 0.0
      %667 = vmatpush1.msra.mxu0 0.0
      %668 = vmatprep.subr.mxu0 0.0
      %669 = vmatpush1.msra.mxu0 0.0
      %670 = vmatprep.subr.mxu0 0.0
      %671 = vmatpush1.msra.mxu0 0.0
      %672 = vmatprep.subr.mxu0 0.0
      %673 = vmatpush1.msra.mxu0 0.0
      %674 = vmatprep.subr.mxu0 0.0
      %675 = vmatpush1.msra.mxu0 0.0
      %676 = vmatprep.subr.mxu0 0.0
      %677 = vmatpush1.msra.mxu0 0.0
      %678 = vmatprep.subr.mxu0 0.0
      %679 = vmatpush1.msra.mxu0 0.0
      %680 = vmatprep.subr.mxu0 0.0
      %681 = vmatpush1.msra.mxu0 0.0
      %682 = vmatprep.subr.mxu0 0.0
      %683 = vmatpush1.msra.mxu0 0.0
      %684 = vmatprep.subr.mxu0 0.0
      %685 = vmatpush1.msra.mxu0 0.0
      %686 = vmatprep.subr.mxu0 0.0
      %687 = vmatpush1.msra.mxu0 0.0
      %688 = vmatprep.subr.mxu0 0.0
      %689 = vmatpush1.msra.mxu0 0.0
      %690 = vmatprep.subr.mxu0 0.0
      %691 = vmatpush1.msra.mxu0 0.0
      %692 = vmatprep.subr.mxu0 0.0
      %693 = vmatpush1.msra.mxu0 0.0
      %694 = vmatprep.mubr.f32.mxu0 0.0
      %695 = vmatmul.mubr.f32.gmra.mrb[0].mxu0 %v628
      %v696 = vpop.f32.mrb[0].mxu0
      %v697 = vadd.f32 %v625, %v696
      %v698 = vpop.f32.mrb[0].mxu0
      %699 = vdwg.mxu0
      %v700 = vsub.f32 0.0, %v697
      %v701 = vmul.f32 %v700, 1.442695
      %v702 = vpow.pop %v701
      %v703 = vadd.f32 %v702, 1.0
      %v704 = vrcp.pop %v703
      %v705 = vmul.f32 1.0, %v704
      %v706 = vsub.f32 %v705, 1.0
      %v707 = vmul.f32 %v706, 2.0
      %v708 = vmul.f32 %v707, 1.442695
      %v709 = vpow.pop %v708
      %vm710 = vcmask 64512
      %711 = vst.msk [vmem:[%s402] sm:$0xff] %vm710, %v709
      %v712 = vlaneseq
      %v713 = vshrl.u32 %v712, 7
      %v714 = vld [vmem:[%s398] sm:$0x1]
      %v715 = vlaneseq
      %v716 = vshrl.u32 %v715, 7
      %v717 = vsub.s32 0, %v716
      %v718 = vrot.slane %v714, %v717
      %vm719 = vcmp.eq.s32.totalorder %v718, %v713
      %v720 = vsel %vm719, 1, 0
      %v721 = vcvt.s32.f32 %v720
      %v723 = vsel %vm710, %v721, 0
      %725 = vmatprep.subr.mxu0 0.0
      %726 = vmatpush1.msra.mxu0 %v709
      %727 = vmatprep.subr.mxu0 0.0
      %728 = vmatpush1.msra.mxu0 0.0
      %729 = vmatprep.subr.mxu0 0.0
      %730 = vmatpush1.msra.mxu0 0.0
      %731 = vmatprep.subr.mxu0 0.0
      %732 = vmatpush1.msra.mxu0 0.0
      %733 = vmatprep.subr.mxu0 0.0
      %734 = vmatpush1.msra.mxu0 0.0
      %735 = vmatprep.subr.mxu0 0.0
      %736 = vmatpush1.msra.mxu0 0.0
      %737 = vmatprep.subr.mxu0 0.0
      %738 = vmatpush1.msra.mxu0 0.0
      %739 = vmatprep.subr.mxu0 0.0
      %740 = vmatpush1.msra.mxu0 0.0
      %741 = vmatprep.subr.mxu0 0.0
      %742 = vmatpush1.msra.mxu0 0.0
      %743 = vmatprep.subr.mxu0 0.0
      %744 = vmatpush1.msra.mxu0 0.0
      %745 = vmatprep.subr.mxu0 0.0
      %746 = vmatpush1.msra.mxu0 0.0
      %747 = vmatprep.subr.mxu0 0.0
      %748 = vmatpush1.msra.mxu0 0.0
      %749 = vmatprep.subr.mxu0 0.0
      %750 = vmatpush1.msra.mxu0 0.0
      %751 = vmatprep.subr.mxu0 0.0
      %752 = vmatpush1.msra.mxu0 0.0
      %753 = vmatprep.subr.mxu0 0.0
      %754 = vmatpush1.msra.mxu0 0.0
      %755 = vmatprep.subr.mxu0 0.0
      %756 = vmatpush1.msra.mxu0 0.0
      %757 = vmatprep.subr.mxu0 0.0
      %758 = vmatpush1.msra.mxu0 0.0
      %759 = vmatprep.subr.mxu0 0.0
      %760 = vmatpush1.msra.mxu0 0.0
      %761 = vmatprep.subr.mxu0 0.0
      %762 = vmatpush1.msra.mxu0 0.0
      %763 = vmatprep.subr.mxu0 0.0
      %764 = vmatpush1.msra.mxu0 0.0
      %765 = vmatprep.subr.mxu0 0.0
      %766 = vmatpush1.msra.mxu0 0.0
      %767 = vmatprep.subr.mxu0 0.0
      %768 = vmatpush1.msra.mxu0 0.0
      %769 = vmatprep.subr.mxu0 0.0
      %770 = vmatpush1.msra.mxu0 0.0
      %771 = vmatprep.subr.mxu0 0.0
      %772 = vmatpush1.msra.mxu0 0.0
      %773 = vmatprep.subr.mxu0 0.0
      %774 = vmatpush1.msra.mxu0 0.0
      %775 = vmatprep.subr.mxu0 0.0
      %776 = vmatpush1.msra.mxu0 0.0
      %777 = vmatprep.subr.mxu0 0.0
      %778 = vmatpush1.msra.mxu0 0.0
      %779 = vmatprep.subr.mxu0 0.0
      %780 = vmatpush1.msra.mxu0 0.0
      %781 = vmatprep.subr.mxu0 0.0
      %782 = vmatpush1.msra.mxu0 0.0
      %783 = vmatprep.subr.mxu0 0.0
      %784 = vmatpush1.msra.mxu0 0.0
      %785 = vmatprep.subr.mxu0 0.0
      %786 = vmatpush1.msra.mxu0 0.0
      %787 = vmatprep.subr.mxu0 0.0
      %788 = vmatpush1.msra.mxu0 0.0
      %789 = vmatprep.mubr.f32.mxu0 0.0
      %790 = vmatmul.mubr.f32.gmra.mrb[0].mxu0 %v723
      %v791 = vpop.f32.mrb[0].mxu0
      %v792 = vadd.f32 0.0, %v791
      %v793 = vpop.f32.mrb[0].mxu0
      %794 = vdwg.mxu0
      %795 = vst.msk [vmem:[%s406] sm:$0xff] %vm710, %v792
      %p796 = scmp.lt.s32.totalorder %s23, 1
      %s797 = scalar_select %p796, %s23, 1
      %s798 = smul.addr %s797, 8
      %s799 = scalar_lea.vmem %s10, %s798
      %p800 = scmp.lt.s32.totalorder %s23, 1
      %s801 = scalar_select %p800, %s23, 1
      %s802 = smul.addr %s801, 8
      %s803 = scalar_lea.vmem %s11, %s802
      // Predicated region
      $region61: #{enhanced_attention_forward.2} parent=59 // pred_check
        %p804 = pneg %p261
      $region62: #{enhanced_attention_forward.2} parent=59 // pred_check_branch
        %806 = sbr.rel (%p804) target = $region64
      $region63: #{enhanced_attention_forward.2} parent=59 // pred_region
        _
      $region64: #{enhanced_attention_forward.2} parent=59 // pred_fallthru
        _
      // Predicated region
      $region65: #{enhanced_attention_forward.2} parent=59 // pred_check
        %p807 = pneg %p287
      $region66: #{enhanced_attention_forward.2} parent=59 // pred_check_branch
        %809 = sbr.rel (%p807) target = $region68
      $region67: #{enhanced_attention_forward.2} parent=59 // pred_region
        _
      $region68: #{enhanced_attention_forward.2} parent=59 // pred_fallthru
        _
    $region60: #{enhanced_attention_forward.2} parent=5 // pred_fallthru
      _
    %p810 = scmp.le.s32.totalorder 2, %s18
    // Predicated region
    $region69: #{enhanced_attention_forward.2} parent=5 // pred_check
      %p811 = pneg %p810
    $region70: #{enhanced_attention_forward.2} parent=5 // pred_check_branch
      %813 = sbr.rel (%p811) target = $region72
    $region71: #{enhanced_attention_forward.2} parent=5 // pred_region
      %s814 = ssub.s32 %s18, 2
      // Predicated region
      $region73: #{enhanced_attention_forward.2} parent=71 // pred_check
        %p815 = pneg %p267
      $region74: #{enhanced_attention_forward.2} parent=71 // pred_check_branch
        %817 = sbr.rel (%p815) target = $region76
      $region75: #{enhanced_attention_forward.2} parent=71 // pred_region
        %p818 = scmp.lt.s32.totalorder %s24, 1
        %s819 = scalar_select %p818, %s24, 1
        %s820 = smul.addr %s819, 8
        %s821 = scalar_lea.vmem %s10, %s820
      $region76: #{enhanced_attention_forward.2} parent=71 // pred_fallthru
        _
      // Predicated region
      $region77: #{enhanced_attention_forward.2} parent=71 // pred_check
        %p822 = pneg %p293
      $region78: #{enhanced_attention_forward.2} parent=71 // pred_check_branch
        %824 = sbr.rel (%p822) target = $region80
      $region79: #{enhanced_attention_forward.2} parent=71 // pred_region
        %p825 = scmp.lt.s32.totalorder %s24, 1
        %s826 = scalar_select %p825, %s24, 1
        %s827 = smul.addr %s826, 8
        %s828 = scalar_lea.vmem %s11, %s827
      $region80: #{enhanced_attention_forward.2} parent=71 // pred_fallthru
        _
    $region72: #{enhanced_attention_forward.2} parent=5 // pred_fallthru
      _
  $region6: #{enhanced_attention_forward.2} parent=0 // loop_footer
    %s22 = sadd.s32 1, %s18
  $region7: #{enhanced_attention_forward.2} parent=0 // loop_footer_branch
    %17 = sbr.rel target = $region3
  $region8: #{enhanced_attention_forward.2} parent=0 // loop_exit
    _

</llo_original>
